<compile_context>
chip_gen: v5e
topology: v5e:2x2
jax: 0.10.0
libtpu: 0.0.40
codegen_flags: <defaults>
</compile_context>

<pallas_src>
import functools
import math

import jax
import jax.numpy as jnp
from jax.experimental import pallas as pl
from jax.experimental.pallas import tpu as pltpu

_HIGHEST = jax.lax.Precision.HIGHEST  # fp32 contract precision on the MXU


def _mhsa_kernel(x_ref, wqkv_ref, wo_ref, bqkv_ref, bo_ref, o_ref, *, num_heads):
    # x_ref / o_ref: (1, S, D) tile for one batch element.
    # wqkv (D, 3D), wo (D, D), bqkv (1, 3D), bo (1, D): VMEM-resident constants.
    x = x_ref[0]                                   # (S, D)
    S, D = x.shape
    d_k = D // num_heads
    scale = 1.0 / math.sqrt(d_k)

    # --- Fused Q|K|V projection: one (S,D)@(D,3D) MXU matmul + one bias add. ---
    qkv = jnp.dot(x, wqkv_ref[...], precision=_HIGHEST,
                  preferred_element_type=jnp.float32) + bqkv_ref[...]

    wo = wo_ref[...]                               # (D, D)
    acc = jnp.zeros((S, D), jnp.float32)

    # --- Per-head attention, heads statically unrolled (H is small). The
    # output projection is fused into the loop, so no concat is needed:
    #   concat_h(attn_h @ v_h) @ Wo == sum_h attn_h @ (v_h @ Wo[h*d_k:(h+1)*d_k, :])
    for h in range(num_heads):
        lo = h * d_k
        q_h = qkv[:, lo:lo + d_k]                  # (S, d_k)
        k_h = qkv[:, D + lo:D + lo + d_k]          # (S, d_k)
        v_h = qkv[:, 2 * D + lo:2 * D + lo + d_k]  # (S, d_k)

        scores = jax.lax.dot_general(              # (S, S): contract d_k, no kT
            q_h, k_h, (((1,), (1,)), ((), ())),
            precision=_HIGHEST,
            preferred_element_type=jnp.float32) * scale
        scores = scores - jnp.max(scores, axis=-1, keepdims=True)
        e = jnp.exp(scores)
        inv = pl.reciprocal(jnp.sum(e, axis=-1, keepdims=True), approx=False)
        attn = e * inv                             # softmax: 1 recip per row

        # This head's slice of the output projection, full-D-lane matmuls only.
        pv = jnp.dot(v_h, wo[lo:lo + d_k, :], precision=_HIGHEST,
                     preferred_element_type=jnp.float32)        # (S, D)
        acc = acc + jnp.dot(attn, pv, precision=_HIGHEST,
                            preferred_element_type=jnp.float32)  # (S, D)

    o_ref[0] = (acc + bo_ref[...]).astype(o_ref.dtype)


def multi_head_self_attention(x, params, *, num_heads):
    """x: (B, S, D) float32.  params: wq/wk/wv/wo (D,D), bq/bk/bv/bo (D,)."""
    B, S, D = x.shape
    assert D % num_heads == 0

    # Pack Q|K|V so the kernel issues one wide projection matmul.
    wqkv = jnp.concatenate([params["wq"], params["wk"], params["wv"]], axis=1)   # (D, 3D)
    bqkv = jnp.concatenate([params["bq"], params["bk"], params["bv"]]).reshape(1, 3 * D)
    bo = params["bo"].reshape(1, D)

    kernel = functools.partial(_mhsa_kernel, num_heads=num_heads)
    const2d = lambda b: (0, 0)   # constant index_map -> weights DMA'd once

    return pl.pallas_call(
        kernel,
        out_shape=jax.ShapeDtypeStruct((B, S, D), x.dtype),
        grid=(B,),
        in_specs=[pl.BlockSpec((1, S, D), lambda b: (b, 0, 0)),
                  pl.BlockSpec((D, 3 * D), const2d),
                  pl.BlockSpec((D, D), const2d),
                  pl.BlockSpec((1, 3 * D), const2d),
                  pl.BlockSpec((1, D), const2d)],
        out_specs=pl.BlockSpec((1, S, D), lambda b: (b, 0, 0)),
        compiler_params=pltpu.CompilerParams(
            dimension_semantics=("parallel",)),
    )(x, wqkv, params["wo"], bqkv, bo)


def _reference(x, p, *, num_heads):
    """Pure-JAX reference mirroring the PyTorch forward (mask=None)."""
    B, S, D = x.shape
    d_k = D // num_heads
    q = jnp.dot(x, p["wq"], precision=_HIGHEST) + p["bq"]
    k = jnp.dot(x, p["wk"], precision=_HIGHEST) + p["bk"]
    v = jnp.dot(x, p["wv"], precision=_HIGHEST) + p["bv"]

    def split(t):
        return t.reshape(B, S, num_heads, d_k).transpose(0, 2, 1, 3)

    qh, kh, vh = split(q), split(k), split(v)
    scores = jnp.einsum("bhqd,bhkd->bhqk", qh, kh,
                        precision=_HIGHEST) / math.sqrt(d_k)
    attn = jax.nn.softmax(scores, axis=-1)
    ctx = jnp.einsum("bhqk,bhkd->bhqd", attn, vh, precision=_HIGHEST)
    ctx = ctx.transpose(0, 2, 1, 3).reshape(B, S, D)
    return jnp.dot(ctx, p["wo"], precision=_HIGHEST) + p["bo"]


if __name__ == "__main__":
    key = jax.random.PRNGKey(0)
    B, S, D, H = 2, 8, 32, 4
    ks = jax.random.split(key, 9)
    x = jax.random.normal(ks[0], (B, S, D), dtype=jnp.float32)
    w_scale = 1.0 / math.sqrt(D)
    params = {
        "wq": jax.random.normal(ks[1], (D, D), jnp.float32) * w_scale,
        "wk": jax.random.normal(ks[2], (D, D), jnp.float32) * w_scale,
        "wv": jax.random.normal(ks[3], (D, D), jnp.float32) * w_scale,
        "wo": jax.random.normal(ks[4], (D, D), jnp.float32) * w_scale,
        "bq": jax.random.normal(ks[5], (D,), jnp.float32) * 0.1,
        "bk": jax.random.normal(ks[6], (D,), jnp.float32) * 0.1,
        "bv": jax.random.normal(ks[7], (D,), jnp.float32) * 0.1,
        "bo": jax.random.normal(ks[8], (D,), jnp.float32) * 0.1,
    }

    out = multi_head_self_attention(x, params, num_heads=H)
    out = jax.block_until_ready(out)

    ref = _reference(x, params, num_heads=H)
    assert out.shape == (B, S, D) and out.dtype == jnp.float32
    max_err = float(jnp.max(jnp.abs(out - ref)))
    assert jnp.allclose(out, ref, atol=1e-4, rtol=1e-4), f"max abs err {max_err}"

    print("KERNEL_OK")
</pallas_src>

<mosaic_0001>
module attributes {stable_mosaic.version = 11 : i64} {
  func.func @_mhsa_kernel(%arg0: i32, %arg1: memref<1x8x32xf32, #tpu.memory_space<vmem>>, %arg2: memref<32x96xf32, #tpu.memory_space<vmem>>, %arg3: memref<32x32xf32, #tpu.memory_space<vmem>>, %arg4: memref<1x96xf32, #tpu.memory_space<vmem>>, %arg5: memref<1x32xf32, #tpu.memory_space<vmem>>, %arg6: memref<1x8x32xf32, #tpu.memory_space<vmem>>) attributes {dimension_semantics = [#tpu.dimension_semantics<parallel>], iteration_bounds = array<i64: 2>, scalar_prefetch = 0 : i64, scratch_operands = 0 : i64, tpu.core_type = #tpu.core_type<tc>, window_params = [{transform_indices = @transform_0, window_bounds = array<i64: 1, 8, 32>}, {pipeline_mode = #tpu.pipeline_mode<synchronous>, transform_indices = @transform_1, window_bounds = array<i64: 32, 96>}, {pipeline_mode = #tpu.pipeline_mode<synchronous>, transform_indices = @transform_2, window_bounds = array<i64: 32, 32>}, {pipeline_mode = #tpu.pipeline_mode<synchronous>, transform_indices = @transform_3, window_bounds = array<i64: 1, 96>}, {pipeline_mode = #tpu.pipeline_mode<synchronous>, transform_indices = @transform_4, window_bounds = array<i64: 1, 32>}, {transform_indices = @transform_5, window_bounds = array<i64: 1, 8, 32>}]} {
    %c0 = arith.constant 0 : index
    %c0_0 = arith.constant 0 : index
    %c0_1 = arith.constant 0 : index
    %0 = vector.load %arg1[%c0, %c0_0, %c0_1] : memref<1x8x32xf32, #tpu.memory_space<vmem>>, vector<1x8x32xf32>
    %1 = vector.shape_cast %0 : vector<1x8x32xf32> to vector<8x32xf32>
    %c0_2 = arith.constant 0 : index
    %c0_3 = arith.constant 0 : index
    %2 = vector.load %arg2[%c0_2, %c0_3] : memref<32x96xf32, #tpu.memory_space<vmem>>, vector<32x96xf32>
    %cst = arith.constant dense<0.000000e+00> : vector<8x96xf32>
    %3 = tpu.matmul %1, %2, %cst {dimension_numbers = #tpu.dot_dimension_numbers<[1], [0], [0], [1], [0, 0, 1, 1], [], []>, precision = #tpu.contract_precision<fp32>} : vector<8x32xf32>, vector<32x96xf32>, vector<8x96xf32> -> vector<8x96xf32>
    %c0_4 = arith.constant 0 : index
    %c0_5 = arith.constant 0 : index
    %4 = vector.load %arg4[%c0_4, %c0_5] : memref<1x96xf32, #tpu.memory_space<vmem>>, vector<1x96xf32>
    %5 = vector.broadcast %4 : vector<1x96xf32> to vector<8x96xf32>
    %6 = arith.addf %3, %5 : vector<8x96xf32>
    %c0_6 = arith.constant 0 : index
    %c0_7 = arith.constant 0 : index
    %7 = vector.load %arg3[%c0_6, %c0_7] : memref<32x32xf32, #tpu.memory_space<vmem>>, vector<32x32xf32>
    %cst_8 = arith.constant 0.000000e+00 : f32
    %8 = vector.broadcast %cst_8 : f32 to vector<8x32xf32>
    %9 = vector.extract_strided_slice %6 {offsets = [0, 0], sizes = [8, 8], strides = [1, 1]} : vector<8x96xf32> to vector<8x8xf32>
    %10 = vector.extract_strided_slice %6 {offsets = [0, 32], sizes = [8, 8], strides = [1, 1]} : vector<8x96xf32> to vector<8x8xf32>
    %11 = vector.extract_strided_slice %6 {offsets = [0, 64], sizes = [8, 8], strides = [1, 1]} : vector<8x96xf32> to vector<8x8xf32>
    %cst_9 = arith.constant dense<0.000000e+00> : vector<8x8xf32>
    %12 = tpu.matmul %9, %10, %cst_9 {dimension_numbers = #tpu.dot_dimension_numbers<[1], [1], [0], [0], [0, 0, 1, 0], [], []>, precision = #tpu.contract_precision<fp32>} : vector<8x8xf32>, vector<8x8xf32>, vector<8x8xf32> -> vector<8x8xf32>
    %cst_10 = arith.constant 0.353553385 : f32
    %13 = vector.broadcast %cst_10 : f32 to vector<8x8xf32>
    %14 = arith.mulf %12, %13 : vector<8x8xf32>
    %cst_11 = arith.constant dense<0xFF800000> : vector<8xf32>
    %15 = vector.multi_reduction <maximumf>, %14, %cst_11 [1] : vector<8x8xf32> to vector<8xf32>
    %16 = vector.shape_cast %15 : vector<8xf32> to vector<8x1xf32>
    %17 = vector.broadcast %16 : vector<8x1xf32> to vector<8x8xf32>
    %18 = arith.subf %14, %17 : vector<8x8xf32>
    %19 = math.exp %18 : vector<8x8xf32>
    %cst_12 = arith.constant dense<0.000000e+00> : vector<8xf32>
    %20 = vector.multi_reduction <add>, %19, %cst_12 [1] : vector<8x8xf32> to vector<8xf32>
    %21 = vector.shape_cast %20 : vector<8xf32> to vector<8x1xf32>
    %22 = tpu.reciprocal %21 : vector<8x1xf32> -> vector<8x1xf32>
    %23 = vector.broadcast %22 : vector<8x1xf32> to vector<8x8xf32>
    %24 = arith.mulf %19, %23 : vector<8x8xf32>
    %25 = vector.extract_strided_slice %7 {offsets = [0, 0], sizes = [8, 32], strides = [1, 1]} : vector<32x32xf32> to vector<8x32xf32>
    %cst_13 = arith.constant dense<0.000000e+00> : vector<8x32xf32>
    %26 = tpu.matmul %11, %25, %cst_13 {dimension_numbers = #tpu.dot_dimension_numbers<[1], [0], [0], [1], [0, 0, 1, 1], [], []>, precision = #tpu.contract_precision<fp32>} : vector<8x8xf32>, vector<8x32xf32>, vector<8x32xf32> -> vector<8x32xf32>
    %cst_14 = arith.constant dense<0.000000e+00> : vector<8x32xf32>
    %27 = tpu.matmul %24, %26, %cst_14 {dimension_numbers = #tpu.dot_dimension_numbers<[1], [0], [0], [1], [0, 0, 1, 1], [], []>, precision = #tpu.contract_precision<fp32>} : vector<8x8xf32>, vector<8x32xf32>, vector<8x32xf32> -> vector<8x32xf32>
    %28 = arith.addf %8, %27 : vector<8x32xf32>
    %29 = vector.extract_strided_slice %6 {offsets = [0, 8], sizes = [8, 8], strides = [1, 1]} : vector<8x96xf32> to vector<8x8xf32>
    %30 = vector.extract_strided_slice %6 {offsets = [0, 40], sizes = [8, 8], strides = [1, 1]} : vector<8x96xf32> to vector<8x8xf32>
    %31 = vector.extract_strided_slice %6 {offsets = [0, 72], sizes = [8, 8], strides = [1, 1]} : vector<8x96xf32> to vector<8x8xf32>
    %cst_15 = arith.constant dense<0.000000e+00> : vector<8x8xf32>
    %32 = tpu.matmul %29, %30, %cst_15 {dimension_numbers = #tpu.dot_dimension_numbers<[1], [1], [0], [0], [0, 0, 1, 0], [], []>, precision = #tpu.contract_precision<fp32>} : vector<8x8xf32>, vector<8x8xf32>, vector<8x8xf32> -> vector<8x8xf32>
    %cst_16 = arith.constant 0.353553385 : f32
    %33 = vector.broadcast %cst_16 : f32 to vector<8x8xf32>
    %34 = arith.mulf %32, %33 : vector<8x8xf32>
    %cst_17 = arith.constant dense<0xFF800000> : vector<8xf32>
    %35 = vector.multi_reduction <maximumf>, %34, %cst_17 [1] : vector<8x8xf32> to vector<8xf32>
    %36 = vector.shape_cast %35 : vector<8xf32> to vector<8x1xf32>
    %37 = vector.broadcast %36 : vector<8x1xf32> to vector<8x8xf32>
    %38 = arith.subf %34, %37 : vector<8x8xf32>
    %39 = math.exp %38 : vector<8x8xf32>
    %cst_18 = arith.constant dense<0.000000e+00> : vector<8xf32>
    %40 = vector.multi_reduction <add>, %39, %cst_18 [1] : vector<8x8xf32> to vector<8xf32>
    %41 = vector.shape_cast %40 : vector<8xf32> to vector<8x1xf32>
    %42 = tpu.reciprocal %41 : vector<8x1xf32> -> vector<8x1xf32>
    %43 = vector.broadcast %42 : vector<8x1xf32> to vector<8x8xf32>
    %44 = arith.mulf %39, %43 : vector<8x8xf32>
    %45 = vector.extract_strided_slice %7 {offsets = [8, 0], sizes = [8, 32], strides = [1, 1]} : vector<32x32xf32> to vector<8x32xf32>
    %cst_19 = arith.constant dense<0.000000e+00> : vector<8x32xf32>
    %46 = tpu.matmul %31, %45, %cst_19 {dimension_numbers = #tpu.dot_dimension_numbers<[1], [0], [0], [1], [0, 0, 1, 1], [], []>, precision = #tpu.contract_precision<fp32>} : vector<8x8xf32>, vector<8x32xf32>, vector<8x32xf32> -> vector<8x32xf32>
    %cst_20 = arith.constant dense<0.000000e+00> : vector<8x32xf32>
    %47 = tpu.matmul %44, %46, %cst_20 {dimension_numbers = #tpu.dot_dimension_numbers<[1], [0], [0], [1], [0, 0, 1, 1], [], []>, precision = #tpu.contract_precision<fp32>} : vector<8x8xf32>, vector<8x32xf32>, vector<8x32xf32> -> vector<8x32xf32>
    %48 = arith.addf %28, %47 : vector<8x32xf32>
    %49 = vector.extract_strided_slice %6 {offsets = [0, 16], sizes = [8, 8], strides = [1, 1]} : vector<8x96xf32> to vector<8x8xf32>
    %50 = vector.extract_strided_slice %6 {offsets = [0, 48], sizes = [8, 8], strides = [1, 1]} : vector<8x96xf32> to vector<8x8xf32>
    %51 = vector.extract_strided_slice %6 {offsets = [0, 80], sizes = [8, 8], strides = [1, 1]} : vector<8x96xf32> to vector<8x8xf32>
    %cst_21 = arith.constant dense<0.000000e+00> : vector<8x8xf32>
    %52 = tpu.matmul %49, %50, %cst_21 {dimension_numbers = #tpu.dot_dimension_numbers<[1], [1], [0], [0], [0, 0, 1, 0], [], []>, precision = #tpu.contract_precision<fp32>} : vector<8x8xf32>, vector<8x8xf32>, vector<8x8xf32> -> vector<8x8xf32>
    %cst_22 = arith.constant 0.353553385 : f32
    %53 = vector.broadcast %cst_22 : f32 to vector<8x8xf32>
    %54 = arith.mulf %52, %53 : vector<8x8xf32>
    %cst_23 = arith.constant dense<0xFF800000> : vector<8xf32>
    %55 = vector.multi_reduction <maximumf>, %54, %cst_23 [1] : vector<8x8xf32> to vector<8xf32>
    %56 = vector.shape_cast %55 : vector<8xf32> to vector<8x1xf32>
    %57 = vector.broadcast %56 : vector<8x1xf32> to vector<8x8xf32>
    %58 = arith.subf %54, %57 : vector<8x8xf32>
    %59 = math.exp %58 : vector<8x8xf32>
    %cst_24 = arith.constant dense<0.000000e+00> : vector<8xf32>
    %60 = vector.multi_reduction <add>, %59, %cst_24 [1] : vector<8x8xf32> to vector<8xf32>
    %61 = vector.shape_cast %60 : vector<8xf32> to vector<8x1xf32>
    %62 = tpu.reciprocal %61 : vector<8x1xf32> -> vector<8x1xf32>
    %63 = vector.broadcast %62 : vector<8x1xf32> to vector<8x8xf32>
    %64 = arith.mulf %59, %63 : vector<8x8xf32>
    %65 = vector.extract_strided_slice %7 {offsets = [16, 0], sizes = [8, 32], strides = [1, 1]} : vector<32x32xf32> to vector<8x32xf32>
    %cst_25 = arith.constant dense<0.000000e+00> : vector<8x32xf32>
    %66 = tpu.matmul %51, %65, %cst_25 {dimension_numbers = #tpu.dot_dimension_numbers<[1], [0], [0], [1], [0, 0, 1, 1], [], []>, precision = #tpu.contract_precision<fp32>} : vector<8x8xf32>, vector<8x32xf32>, vector<8x32xf32> -> vector<8x32xf32>
    %cst_26 = arith.constant dense<0.000000e+00> : vector<8x32xf32>
    %67 = tpu.matmul %64, %66, %cst_26 {dimension_numbers = #tpu.dot_dimension_numbers<[1], [0], [0], [1], [0, 0, 1, 1], [], []>, precision = #tpu.contract_precision<fp32>} : vector<8x8xf32>, vector<8x32xf32>, vector<8x32xf32> -> vector<8x32xf32>
    %68 = arith.addf %48, %67 : vector<8x32xf32>
    %69 = vector.extract_strided_slice %6 {offsets = [0, 24], sizes = [8, 8], strides = [1, 1]} : vector<8x96xf32> to vector<8x8xf32>
    %70 = vector.extract_strided_slice %6 {offsets = [0, 56], sizes = [8, 8], strides = [1, 1]} : vector<8x96xf32> to vector<8x8xf32>
    %71 = vector.extract_strided_slice %6 {offsets = [0, 88], sizes = [8, 8], strides = [1, 1]} : vector<8x96xf32> to vector<8x8xf32>
    %cst_27 = arith.constant dense<0.000000e+00> : vector<8x8xf32>
    %72 = tpu.matmul %69, %70, %cst_27 {dimension_numbers = #tpu.dot_dimension_numbers<[1], [1], [0], [0], [0, 0, 1, 0], [], []>, precision = #tpu.contract_precision<fp32>} : vector<8x8xf32>, vector<8x8xf32>, vector<8x8xf32> -> vector<8x8xf32>
    %cst_28 = arith.constant 0.353553385 : f32
    %73 = vector.broadcast %cst_28 : f32 to vector<8x8xf32>
    %74 = arith.mulf %72, %73 : vector<8x8xf32>
    %cst_29 = arith.constant dense<0xFF800000> : vector<8xf32>
    %75 = vector.multi_reduction <maximumf>, %74, %cst_29 [1] : vector<8x8xf32> to vector<8xf32>
    %76 = vector.shape_cast %75 : vector<8xf32> to vector<8x1xf32>
    %77 = vector.broadcast %76 : vector<8x1xf32> to vector<8x8xf32>
    %78 = arith.subf %74, %77 : vector<8x8xf32>
    %79 = math.exp %78 : vector<8x8xf32>
    %cst_30 = arith.constant dense<0.000000e+00> : vector<8xf32>
    %80 = vector.multi_reduction <add>, %79, %cst_30 [1] : vector<8x8xf32> to vector<8xf32>
    %81 = vector.shape_cast %80 : vector<8xf32> to vector<8x1xf32>
    %82 = tpu.reciprocal %81 : vector<8x1xf32> -> vector<8x1xf32>
    %83 = vector.broadcast %82 : vector<8x1xf32> to vector<8x8xf32>
    %84 = arith.mulf %79, %83 : vector<8x8xf32>
    %85 = vector.extract_strided_slice %7 {offsets = [24, 0], sizes = [8, 32], strides = [1, 1]} : vector<32x32xf32> to vector<8x32xf32>
    %cst_31 = arith.constant dense<0.000000e+00> : vector<8x32xf32>
    %86 = tpu.matmul %71, %85, %cst_31 {dimension_numbers = #tpu.dot_dimension_numbers<[1], [0], [0], [1], [0, 0, 1, 1], [], []>, precision = #tpu.contract_precision<fp32>} : vector<8x8xf32>, vector<8x32xf32>, vector<8x32xf32> -> vector<8x32xf32>
    %cst_32 = arith.constant dense<0.000000e+00> : vector<8x32xf32>
    %87 = tpu.matmul %84, %86, %cst_32 {dimension_numbers = #tpu.dot_dimension_numbers<[1], [0], [0], [1], [0, 0, 1, 1], [], []>, precision = #tpu.contract_precision<fp32>} : vector<8x8xf32>, vector<8x32xf32>, vector<8x32xf32> -> vector<8x32xf32>
    %88 = arith.addf %68, %87 : vector<8x32xf32>
    %c0_33 = arith.constant 0 : index
    %c0_34 = arith.constant 0 : index
    %89 = vector.load %arg5[%c0_33, %c0_34] : memref<1x32xf32, #tpu.memory_space<vmem>>, vector<1x32xf32>
    %90 = vector.broadcast %89 : vector<1x32xf32> to vector<8x32xf32>
    %91 = arith.addf %88, %90 : vector<8x32xf32>
    %c0_35 = arith.constant 0 : index
    %c0_36 = arith.constant 0 : index
    %c0_37 = arith.constant 0 : index
    %92 = vector.load %arg6[%c0_35, %c0_36, %c0_37] : memref<1x8x32xf32, #tpu.memory_space<vmem>>, vector<1x8x32xf32>
    %93 = vector.shape_cast %92 : vector<1x8x32xf32> to vector<8x32xf32>
    %94 = vector.shape_cast %91 : vector<8x32xf32> to vector<1x8x32xf32>
    tpu.vector_store %arg6[%c0_35, %c0_36, %c0_37], %94 {strides = array<i32>} : memref<1x8x32xf32, #tpu.memory_space<vmem>>, vector<1x8x32xf32>,
    return
  }
  func.func @transform_0(%arg0: i32) -> (i32, i32, i32) {
    %c0_i32 = arith.constant 0 : i32
    %c0_i32_0 = arith.constant 0 : i32
    %c0_i32_1 = arith.constant 0 : i32
    return %arg0, %c0_i32, %c0_i32_0 : i32, i32, i32
  }
  func.func @transform_1(%arg0: i32) -> (i32, i32) {
    %c0_i32 = arith.constant 0 : i32
    %c0_i32_0 = arith.constant 0 : i32
    %c0_i32_1 = arith.constant 0 : i32
    return %c0_i32, %c0_i32_0 : i32, i32
  }
  func.func @transform_2(%arg0: i32) -> (i32, i32) {
    %c0_i32 = arith.constant 0 : i32
    %c0_i32_0 = arith.constant 0 : i32
    %c0_i32_1 = arith.constant 0 : i32
    return %c0_i32, %c0_i32_0 : i32, i32
  }
  func.func @transform_3(%arg0: i32) -> (i32, i32) {
    %c0_i32 = arith.constant 0 : i32
    %c0_i32_0 = arith.constant 0 : i32
    %c0_i32_1 = arith.constant 0 : i32
    return %c0_i32, %c0_i32_0 : i32, i32
  }
  func.func @transform_4(%arg0: i32) -> (i32, i32) {
    %c0_i32 = arith.constant 0 : i32
    %c0_i32_0 = arith.constant 0 : i32
    %c0_i32_1 = arith.constant 0 : i32
    return %c0_i32, %c0_i32_0 : i32, i32
  }
  func.func @transform_5(%arg0: i32) -> (i32, i32, i32) {
    %c0_i32 = arith.constant 0 : i32
    %c0_i32_0 = arith.constant 0 : i32
    %c0_i32_1 = arith.constant 0 : i32
    return %arg0, %c0_i32, %c0_i32_0 : i32, i32, i32
  }
}

</mosaic_0001>

<llo_original>
// kernel: tpu_custom_call.1
$region0: #{tpu_custom_call.1}
  #allocation0 [shape = 'u32[]', space=smem, size = 0x4, offset = 0x4, fixed_abs, tag = 'smem constant byte address 0x4 - core index']
  #allocation1 [shape = 'u32[72,128]{1,0:T(1,128)}', space=vmem, size = 0x9000, scoped, tag = 'internal scratch']
  %s0 = inlined_call_operand.hbm [shape: f32[2,8,32], index: 0, kind: input, shape index: {}]
  %s1 = inlined_call_operand.hbm [shape: f32[32,96], index: 1, kind: input, shape index: {}]
  %s2 = inlined_call_operand.hbm [shape: f32[32,32], index: 2, kind: input, shape index: {}]
  %s3 = inlined_call_operand.vmem [shape: f32[1,96], index: 3, kind: input, shape index: {}]
  %s4 = inlined_call_operand.vmem [shape: f32[1,32], index: 4, kind: input, shape index: {}]
  %s5 = inlined_call_operand.hbm [shape: f32[2,8,32], index: 5, kind: output, shape index: {}]
  %s6 = sld [smem:[#allocation0]]
  $region65: #{tpu_custom_call.1} parent=0
    _
  %s8 = ssub.s32 1, %s6
  %s9 = scalar_select 0, %s8, %s6
  $region1: #{tpu_custom_call.1} parent=0
    #allocation2 [shape = 'u8[8192]{0}', space=vmem, size = 0x2000, scoped, tag = 'input window, operand 0']
    #allocation3 [shape = 's32[2]{0}', space=sflag, size = 0x8, scoped, tag = 'scoped memory for tpu_custom_call.1']
    #allocation4 [shape = 's32[2]{0}', space=sflag, size = 0x8, scoped, tag = 'scoped memory for tpu_custom_call.1']
    #allocation5 [shape = 'u8[16384]{0}', space=vmem, size = 0x4000, scoped, tag = 'input window, operand 1, single buffered']
    #allocation6 [shape = 's32[1]{0}', space=sflag, size = 0x4, scoped, tag = 'scoped memory for tpu_custom_call.1']
    #allocation7 [shape = 'u8[16384]{0}', space=vmem, size = 0x4000, scoped, tag = 'input window, operand 2, single buffered']
    #allocation8 [shape = 'u8[8192]{0}', space=vmem, size = 0x2000, scoped, tag = 'output window, operand 0']
    %10 = vsyncpa [#allocation3], 0
    %s11 = scalar_lea.sflag [#allocation3], 1
    %12 = vsyncpa %s11, 0
    %13 = vsyncpa [#allocation6], 0
    %14 = vsyncpa [#allocation4], 0
    %s15 = scalar_lea.sflag [#allocation4], 1
    %16 = vsyncpa %s15, 0
    loop: start=0, step=1, limit=4
    $region2: #{tpu_custom_call.1} parent=1 // loop_pre_header
      _
    $region3: #{tpu_custom_call.1} parent=1 // loop_header
      %s18 = sphi 0, %s22
      %p19 = scmp.ge.s32.totalorder %s18, 4
      %s28 = sphi 0, %s30
      %s31 = sphi 0, %s28
      %s32 = sphi 0, %s31
      %s48 = sphi 0, %s32
      %s52 = sphi 0, %s52
      %s54 = sphi 0, %s52
      %s55 = sphi 0, %s54
      %s69 = sphi 0, %s55
      %s73 = sphi 0, %s73
      %s75 = sphi 0, %s73
      %s76 = sphi 0, %s75
      %s90 = sphi 0, %s76
      %s94 = sphi 0, %s94
      %s96 = sphi 0, %s94
      %s97 = sphi 0, %s96
      %s111 = sphi 0, %s97
      %s115 = sphi 0, %s115
      %s117 = sphi 0, %s115
      %s118 = sphi 0, %s117
      %s132 = sphi 0, %s118
      %s138 = sphi 0, %s140
      %s141 = sphi 0, %s138
      %s142 = sphi 0, %s141
      %s158 = sphi 0, %s142
    $region4: #{tpu_custom_call.1} parent=1 // loop_header_branch
      %21 = sbr.rel (%p19) target = $region8
    $region5: #{tpu_custom_call.1} parent=1 // loop_body
      %s23 = ssub.s32 %s18, 1
      %s24 = ssub.s32 %s18, 2
      %s25 = sadd.s32 %s18, 1
      %s26 = ssub.s32 %s18, %s25
      %p27 = scmp.eq.s32.totalorder %s26, 0
      %s29 = sadd.s32 %s28, 1
      %s30 = scalar_select %p27, %s28, %s29
      %p33 = pneg %p27
      %p34 = scmp.eq.s32.totalorder %s18, 1
      %p35 = por %p33, %p34
      %p36 = scmp.ne.s32.totalorder %s28, %s31
      %p37 = scmp.eq.s32.totalorder %s18, 0
      %p38 = por %p36, %p37
      %p39 = scmp.ne.s32.totalorder %s28, %s31
      %p40 = scmp.eq.s32.totalorder %s23, 1
      %p41 = por %p39, %p40
      %p42 = scmp.ne.s32.totalorder %s31, %s32
      %p43 = scmp.eq.s32.totalorder %s23, 0
      %p44 = por %p42, %p43
      %p45 = scmp.ne.s32.totalorder %s31, %s32
      %p46 = scmp.eq.s32.totalorder %s24, 1
      %p47 = por %p45, %p46
      %p49 = scmp.ne.s32.totalorder %s32, %s48
      %p50 = scmp.eq.s32.totalorder %s24, 0
      %p51 = por %p49, %p50
      %s53 = sadd.s32 %s52, 1
      %p56 = scmp.eq.s32.totalorder %s18, 1
      %p57 = scmp.ne.s32.totalorder %s52, %s54
      %p58 = scmp.eq.s32.totalorder %s18, 0
      %p59 = por %p57, %p58
      %p60 = scmp.ne.s32.totalorder %s52, %s54
      %p61 = scmp.eq.s32.totalorder %s23, 1
      %p62 = por %p60, %p61
      %p63 = scmp.ne.s32.totalorder %s54, %s55
      %p64 = scmp.eq.s32.totalorder %s23, 0
      %p65 = por %p63, %p64
      %p66 = scmp.ne.s32.totalorder %s54, %s55
      %p67 = scmp.eq.s32.totalorder %s24, 1
      %p68 = por %p66, %p67
      %p70 = scmp.ne.s32.totalorder %s55, %s69
      %p71 = scmp.eq.s32.totalorder %s24, 0
      %p72 = por %p70, %p71
      %s74 = sadd.s32 %s73, 1
      %p77 = scmp.eq.s32.totalorder %s18, 1
      %p78 = scmp.ne.s32.totalorder %s73, %s75
      %p79 = scmp.eq.s32.totalorder %s18, 0
      %p80 = por %p78, %p79
      %p81 = scmp.ne.s32.totalorder %s73, %s75
      %p82 = scmp.eq.s32.totalorder %s23, 1
      %p83 = por %p81, %p82
      %p84 = scmp.ne.s32.totalorder %s75, %s76
      %p85 = scmp.eq.s32.totalorder %s23, 0
      %p86 = por %p84, %p85
      %p87 = scmp.ne.s32.totalorder %s75, %s76
      %p88 = scmp.eq.s32.totalorder %s24, 1
      %p89 = por %p87, %p88
      %p91 = scmp.ne.s32.totalorder %s76, %s90
      %p92 = scmp.eq.s32.totalorder %s24, 0
      %p93 = por %p91, %p92
      %s95 = sadd.s32 %s94, 1
      %p98 = scmp.eq.s32.totalorder %s18, 1
      %p99 = scmp.ne.s32.totalorder %s94, %s96
      %p100 = scmp.eq.s32.totalorder %s18, 0
      %p101 = por %p99, %p100
      %p102 = scmp.ne.s32.totalorder %s94, %s96
      %p103 = scmp.eq.s32.totalorder %s23, 1
      %p104 = por %p102, %p103
      %p105 = scmp.ne.s32.totalorder %s96, %s97
      %p106 = scmp.eq.s32.totalorder %s23, 0
      %p107 = por %p105, %p106
      %p108 = scmp.ne.s32.totalorder %s96, %s97
      %p109 = scmp.eq.s32.totalorder %s24, 1
      %p110 = por %p108, %p109
      %p112 = scmp.ne.s32.totalorder %s97, %s111
      %p113 = scmp.eq.s32.totalorder %s24, 0
      %p114 = por %p112, %p113
      %s116 = sadd.s32 %s115, 1
      %p119 = scmp.eq.s32.totalorder %s18, 1
      %p120 = scmp.ne.s32.totalorder %s115, %s117
      %p121 = scmp.eq.s32.totalorder %s18, 0
      %p122 = por %p120, %p121
      %p123 = scmp.ne.s32.totalorder %s115, %s117
      %p124 = scmp.eq.s32.totalorder %s23, 1
      %p125 = por %p123, %p124
      %p126 = scmp.ne.s32.totalorder %s117, %s118
      %p127 = scmp.eq.s32.totalorder %s23, 0
      %p128 = por %p126, %p127
      %p129 = scmp.ne.s32.totalorder %s117, %s118
      %p130 = scmp.eq.s32.totalorder %s24, 1
      %p131 = por %p129, %p130
      %p133 = scmp.ne.s32.totalorder %s118, %s132
      %p134 = scmp.eq.s32.totalorder %s24, 0
      %p135 = por %p133, %p134
      %s136 = ssub.s32 %s18, %s25
      %p137 = scmp.eq.s32.totalorder %s136, 0
      %s139 = sadd.s32 %s138, 1
      %s140 = scalar_select %p137, %s138, %s139
      %p143 = pneg %p137
      %p144 = scmp.eq.s32.totalorder %s18, 1
      %p145 = por %p143, %p144
      %p146 = scmp.ne.s32.totalorder %s138, %s141
      %p147 = scmp.eq.s32.totalorder %s18, 0
      %p148 = por %p146, %p147
      %p149 = scmp.ne.s32.totalorder %s138, %s141
      %p150 = scmp.eq.s32.totalorder %s23, 1
      %p151 = por %p149, %p150
      %p152 = scmp.ne.s32.totalorder %s141, %s142
      %p153 = scmp.eq.s32.totalorder %s23, 0
      %p154 = por %p152, %p153
      %p155 = scmp.ne.s32.totalorder %s141, %s142
      %p156 = scmp.eq.s32.totalorder %s24, 1
      %p157 = por %p155, %p156
      %p159 = scmp.ne.s32.totalorder %s142, %s158
      %p160 = scmp.eq.s32.totalorder %s24, 0
      %p161 = por %p159, %p160
      %p162 = scmp.le.s32.totalorder 1, %s18
      %p163 = scmp.lt.s32.totalorder %s18, 3
      %p164 = pnand %p162, %p163
      %p165 = pneg %p164
      // Predicated region
      $region9: #{tpu_custom_call.1} parent=5 // pred_check
        _
      $region10: #{tpu_custom_call.1} parent=5 // pred_check_branch
        %167 = sbr.rel (%p164) target = $region12
      $region11: #{tpu_custom_call.1} parent=5 // pred_region
        %s168 = ssub.s32 %s18, 1
        // Predicated region
        $region13: #{tpu_custom_call.1} parent=11 // pred_check
          %p169 = pneg %p65
        $region14: #{tpu_custom_call.1} parent=11 // pred_check_branch
          %171 = sbr.rel (%p169) target = $region16
        $region15: #{tpu_custom_call.1} parent=11 // pred_region
          %173 = vsyncadd [#allocation6], 0
          %s174 = sshll.u32 %s1, 4
          %s175 = int_to_ptr.hbm [resolvable:$true] %s174
          %s176 = sshll.u32 [#allocation5], 4
          %s177 = int_to_ptr.vmem [resolvable:$true] %s176
          %182 = dma.hbm_to_vmem [thread:$0]  %s175, 512, %s177, [#allocation6], 128, 128, 8
        $region16: #{tpu_custom_call.1} parent=11 // pred_fallthru
          _
        // Predicated region
        $region17: #{tpu_custom_call.1} parent=11 // pred_check
          %p183 = pneg %p86
        $region18: #{tpu_custom_call.1} parent=11 // pred_check_branch
          %185 = sbr.rel (%p183) target = $region20
        $region19: #{tpu_custom_call.1} parent=11 // pred_region
          %187 = vsyncadd [#allocation6], 0
          %s188 = sshll.u32 %s2, 4
          %s189 = int_to_ptr.hbm [resolvable:$true] %s188
          %s190 = sshll.u32 [#allocation7], 4
          %s191 = int_to_ptr.vmem [resolvable:$true] %s190
          %196 = dma.hbm_to_vmem [thread:$0]  %s189, 512, %s191, [#allocation6], 128, 128, 8
        $region20: #{tpu_custom_call.1} parent=11 // pred_fallthru
          _
        // Predicated region
        $region21: #{tpu_custom_call.1} parent=11 // pred_check
          %p197 = pneg %p107
        $region22: #{tpu_custom_call.1} parent=11 // pred_check_branch
          %199 = sbr.rel (%p197) target = $region24
        $region23: #{tpu_custom_call.1} parent=11 // pred_region
          _
        $region24: #{tpu_custom_call.1} parent=11 // pred_fallthru
          _
        // Predicated region
        $region25: #{tpu_custom_call.1} parent=11 // pred_check
          %p200 = pneg %p128
        $region26: #{tpu_custom_call.1} parent=11 // pred_check_branch
          %202 = sbr.rel (%p200) target = $region28
        $region27: #{tpu_custom_call.1} parent=11 // pred_region
          _
        $region28: #{tpu_custom_call.1} parent=11 // pred_fallthru
          _
      $region12: #{tpu_custom_call.1} parent=5 // pred_fallthru
        _
      %p203 = scmp.lt.s32.totalorder %s18, 2
      // Predicated region
      $region29: #{tpu_custom_call.1} parent=5 // pred_check
        %p204 = pneg %p203
      $region30: #{tpu_custom_call.1} parent=5 // pred_check_branch
        %206 = sbr.rel (%p204) target = $region32
      $region31: #{tpu_custom_call.1} parent=5 // pred_region
        // Predicated region
        $region33: #{tpu_custom_call.1} parent=31 // pred_check
          %p207 = pneg %p38
        $region34: #{tpu_custom_call.1} parent=31 // pred_check_branch
          %209 = sbr.rel (%p207) target = $region36
        $region35: #{tpu_custom_call.1} parent=31 // pred_region
          %s210 = sand.u32 %s28, 1
          %s211 = scalar_lea.sflag [#allocation3], %s210
          %s212 = sand.u32 %s28, 1
          %s213 = smul.addr %s212, 8
          %s214 = scalar_lea.vmem [#allocation2], %s213
          %216 = vsyncadd %s211, 0
          %s217 = smul.addr %s18, 8
          %s218 = scalar_lea.hbm %s0, %s217
          %s220 = sshll.u32 %s218, 4
          %s221 = int_to_ptr.hbm [resolvable:$true] %s220
          %s222 = sshll.u32 %s214, 4
          %s223 = int_to_ptr.vmem [resolvable:$true] %s222
          %225 = dma.hbm_to_vmem [thread:$0]  %s221, 128, %s223, %s211
        $region36: #{tpu_custom_call.1} parent=31 // pred_fallthru
          _
      $region32: #{tpu_custom_call.1} parent=5 // pred_fallthru
        _
      %p226 = scmp.le.s32.totalorder 1, %s18
      %p227 = scmp.lt.s32.totalorder %s18, 3
      %p228 = pnand %p226, %p227
      %p229 = pneg %p228
      // Predicated region
      $region37: #{tpu_custom_call.1} parent=5 // pred_check
        _
      $region38: #{tpu_custom_call.1} parent=5 // pred_check_branch
        %231 = sbr.rel (%p228) target = $region40
      $region39: #{tpu_custom_call.1} parent=5 // pred_region
        %s232 = ssub.s32 %s18, 1
        %s233 = sand.u32 %s31, 1
        %s234 = scalar_lea.sflag [#allocation3], %s233
        %s235 = sand.u32 %s31, 1
        %s236 = smul.addr %s235, 8
        %s237 = scalar_lea.vmem [#allocation2], %s236
        // Predicated region
        $region41: #{tpu_custom_call.1} parent=39 // pred_check
          %p238 = pneg %p44
        $region42: #{tpu_custom_call.1} parent=39 // pred_check_branch
          %240 = sbr.rel (%p238) target = $region44
        $region43: #{tpu_custom_call.1} parent=39 // pred_region
          %242 = dma.done %s234, 128
        $region44: #{tpu_custom_call.1} parent=39 // pred_fallthru
          _
        // Predicated region
        $region45: #{tpu_custom_call.1} parent=39 // pred_check
          %p243 = pneg %p65
        $region46: #{tpu_custom_call.1} parent=39 // pred_check_branch
          %245 = sbr.rel (%p243) target = $region48
        $region47: #{tpu_custom_call.1} parent=39 // pred_region
          %247 = dma.done [#allocation6], 512
        $region48: #{tpu_custom_call.1} parent=39 // pred_fallthru
          _
        // Predicated region
        $region49: #{tpu_custom_call.1} parent=39 // pred_check
          %p248 = pneg %p86
        $region50: #{tpu_custom_call.1} parent=39 // pred_check_branch
          %250 = sbr.rel (%p248) target = $region52
        $region51: #{tpu_custom_call.1} parent=39 // pred_region
          %252 = dma.done [#allocation6], 512
        $region52: #{tpu_custom_call.1} parent=39 // pred_fallthru
          _
        %s253 = sand.u32 %s31, 1
        %s254 = scalar_lea.sflag [#allocation3], %s253
        %s255 = sand.u32 %s31, 1
        %s256 = smul.addr %s255, 8
        %s257 = scalar_lea.vmem [#allocation2], %s256
        %p258 = pneg %p44
        %p259 = pneg %p41
        %p260 = pneg %p65
        %p261 = pneg %p62
        %p262 = pneg %p86
        %p263 = pneg %p83
        %p264 = pneg %p107
        %p265 = pneg %p104
        %p266 = pneg %p128
        %p267 = pneg %p125
        %p268 = pneg %p154
        %p269 = pneg %p151
        %s270 = sand.u32 %s141, 1
        %s271 = scalar_lea.sflag [#allocation4], %s270
        %s272 = sand.u32 %s141, 1
        %s273 = smul.addr %s272, 8
        %s274 = scalar_lea.vmem [#allocation8], %s273
        %v275 = vld [vmem:[%s237] sm:$0xff]
        %v276 = vld [vmem:[#allocation5] sm:$0xff]
        %v277 = vld [vmem:[#allocation5 + $0x8] sm:$0xff]
        %v278 = vld [vmem:[#allocation5 + $0x10] sm:$0xff]
        %v279 = vld [vmem:[#allocation5 + $0x18] sm:$0xff]
        %v280 = vld [vmem:[%s3] sm:$0x1]
        %v282 = vperm.slane %v280, 0
        %vm284 = vcmask 261120
        %v286 = vsel %vm284, %v275, 0
        %288 = vmatpush.msra.mxu0 0.0
        %289 = vmatpush.msra.mxu0 0.0
        %290 = vmatpush.msra.mxu0 0.0
        %291 = vmatpush.msra.mxu0 0.0
        %292 = vmatpush.msra.mxu0 0.0
        %293 = vmatpush.msra.mxu0 0.0
        %294 = vmatpush.msra.mxu0 0.0
        %295 = vmatpush.msra.mxu0 0.0
        %296 = vmatpush.msra.mxu0 0.0
        %297 = vmatpush.msra.mxu0 0.0
        %298 = vmatpush.msra.mxu0 0.0
        %299 = vmatpush.msra.mxu0 0.0
        %v300 = vand.u32 %v279, 4294901760
        %301 = vmatpush.msra.mxu0 %v300
        %v302 = vand.u32 %v278, 4294901760
        %303 = vmatpush.msra.mxu0 %v302
        %v304 = vand.u32 %v277, 4294901760
        %305 = vmatpush.msra.mxu0 %v304
        %v306 = vand.u32 %v276, 4294901760
        %307 = vmatpush.msra.mxu0 %v306
        %v308 = vand.u32 %v286, 4294901760
        %v309 = vsub.f32 %v286, %v308
        %v310 = vand.u32 %v309, 4294901760
        %v311 = vsub.f32 %v309, %v310
        %v312 = vand.u32 %v311, 4294901760
        %313 = vmatmul.f32.gmra.mxu0 %v312
        %v314 = vpop.f32.mrf.mxu0
        %v315 = vadd.f32 %v282, %v314
        %316 = vdwg.mxu0
        %317 = vmatpush.msra.mxu0 0.0
        %318 = vmatpush.msra.mxu0 0.0
        %319 = vmatpush.msra.mxu0 0.0
        %320 = vmatpush.msra.mxu0 0.0
        %321 = vmatpush.msra.mxu0 0.0
        %322 = vmatpush.msra.mxu0 0.0
        %323 = vmatpush.msra.mxu0 0.0
        %324 = vmatpush.msra.mxu0 0.0
        %325 = vmatpush.msra.mxu0 0.0
        %326 = vmatpush.msra.mxu0 0.0
        %327 = vmatpush.msra.mxu0 0.0
        %328 = vmatpush.msra.mxu0 0.0
        %v329 = vand.u32 %v279, 4294901760
        %v330 = vsub.f32 %v279, %v329
        %v331 = vand.u32 %v330, 4294901760
        %v332 = vsub.f32 %v330, %v331
        %v333 = vand.u32 %v332, 4294901760
        %334 = vmatpush.msra.mxu0 %v333
        %v335 = vand.u32 %v278, 4294901760
        %v336 = vsub.f32 %v278, %v335
        %v337 = vand.u32 %v336, 4294901760
        %v338 = vsub.f32 %v336, %v337
        %v339 = vand.u32 %v338, 4294901760
        %340 = vmatpush.msra.mxu0 %v339
        %v341 = vand.u32 %v277, 4294901760
        %v342 = vsub.f32 %v277, %v341
        %v343 = vand.u32 %v342, 4294901760
        %v344 = vsub.f32 %v342, %v343
        %v345 = vand.u32 %v344, 4294901760
        %346 = vmatpush.msra.mxu0 %v345
        %v347 = vand.u32 %v276, 4294901760
        %v348 = vsub.f32 %v276, %v347
        %v349 = vand.u32 %v348, 4294901760
        %v350 = vsub.f32 %v348, %v349
        %v351 = vand.u32 %v350, 4294901760
        %352 = vmatpush.msra.mxu0 %v351
        %v353 = vand.u32 %v286, 4294901760
        %354 = vmatmul.f32.gmra.mxu0 %v353
        %v355 = vpop.f32.mrf.mxu0
        %v356 = vadd.f32 %v315, %v355
        %357 = vdwg.mxu0
        %358 = vmatpush.msra.mxu0 0.0
        %359 = vmatpush.msra.mxu0 0.0
        %360 = vmatpush.msra.mxu0 0.0
        %361 = vmatpush.msra.mxu0 0.0
        %362 = vmatpush.msra.mxu0 0.0
        %363 = vmatpush.msra.mxu0 0.0
        %364 = vmatpush.msra.mxu0 0.0
        %365 = vmatpush.msra.mxu0 0.0
        %366 = vmatpush.msra.mxu0 0.0
        %367 = vmatpush.msra.mxu0 0.0
        %368 = vmatpush.msra.mxu0 0.0
        %369 = vmatpush.msra.mxu0 0.0
        %v370 = vand.u32 %v279, 4294901760
        %v371 = vsub.f32 %v279, %v370
        %372 = vmatpush.msra.mxu0 %v371
        %v373 = vand.u32 %v278, 4294901760
        %v374 = vsub.f32 %v278, %v373
        %375 = vmatpush.msra.mxu0 %v374
        %v376 = vand.u32 %v277, 4294901760
        %v377 = vsub.f32 %v277, %v376
        %378 = vmatpush.msra.mxu0 %v377
        %v379 = vand.u32 %v276, 4294901760
        %v380 = vsub.f32 %v276, %v379
        %381 = vmatpush.msra.mxu0 %v380
        %v382 = vand.u32 %v286, 4294901760
        %v383 = vsub.f32 %v286, %v382
        %384 = vmatmul.f32.gmra.mxu0 %v383
        %v385 = vpop.f32.mrf.mxu0
        %v386 = vadd.f32 %v356, %v385
        %387 = vdwg.mxu0
        %388 = vmatpush.msra.mxu0 0.0
        %389 = vmatpush.msra.mxu0 0.0
        %390 = vmatpush.msra.mxu0 0.0
        %391 = vmatpush.msra.mxu0 0.0
        %392 = vmatpush.msra.mxu0 0.0
        %393 = vmatpush.msra.mxu0 0.0
        %394 = vmatpush.msra.mxu0 0.0
        %395 = vmatpush.msra.mxu0 0.0
        %396 = vmatpush.msra.mxu0 0.0
        %397 = vmatpush.msra.mxu0 0.0
        %398 = vmatpush.msra.mxu0 0.0
        %399 = vmatpush.msra.mxu0 0.0
        %v400 = vand.u32 %v279, 4294901760
        %401 = vmatpush.msra.mxu0 %v400
        %v402 = vand.u32 %v278, 4294901760
        %403 = vmatpush.msra.mxu0 %v402
        %v404 = vand.u32 %v277, 4294901760
        %405 = vmatpush.msra.mxu0 %v404
        %v406 = vand.u32 %v276, 4294901760
        %407 = vmatpush.msra.mxu0 %v406
        %v408 = vand.u32 %v286, 4294901760
        %v409 = vsub.f32 %v286, %v408
        %v410 = vand.u32 %v409, 4294901760
        %411 = vmatmul.f32.gmra.mxu0 %v410
        %v412 = vpop.f32.mrf.mxu0
        %v413 = vadd.f32 %v386, %v412
        %414 = vdwg.mxu0
        %415 = vmatpush.msra.mxu0 0.0
        %416 = vmatpush.msra.mxu0 0.0
        %417 = vmatpush.msra.mxu0 0.0
        %418 = vmatpush.msra.mxu0 0.0
        %419 = vmatpush.msra.mxu0 0.0
        %420 = vmatpush.msra.mxu0 0.0
        %421 = vmatpush.msra.mxu0 0.0
        %422 = vmatpush.msra.mxu0 0.0
        %423 = vmatpush.msra.mxu0 0.0
        %424 = vmatpush.msra.mxu0 0.0
        %425 = vmatpush.msra.mxu0 0.0
        %426 = vmatpush.msra.mxu0 0.0
        %v427 = vand.u32 %v279, 4294901760
        %v428 = vsub.f32 %v279, %v427
        %v429 = vand.u32 %v428, 4294901760
        %430 = vmatpush.msra.mxu0 %v429
        %v431 = vand.u32 %v278, 4294901760
        %v432 = vsub.f32 %v278, %v431
        %v433 = vand.u32 %v432, 4294901760
        %434 = vmatpush.msra.mxu0 %v433
        %v435 = vand.u32 %v277, 4294901760
        %v436 = vsub.f32 %v277, %v435
        %v437 = vand.u32 %v436, 4294901760
        %438 = vmatpush.msra.mxu0 %v437
        %v439 = vand.u32 %v276, 4294901760
        %v440 = vsub.f32 %v276, %v439
        %v441 = vand.u32 %v440, 4294901760
        %442 = vmatpush.msra.mxu0 %v441
        %v443 = vand.u32 %v286, 4294901760
        %444 = vmatmul.f32.gmra.mxu0 %v443
        %v445 = vpop.f32.mrf.mxu0
        %v446 = vadd.f32 %v413, %v445
        %447 = vdwg.mxu0
        %448 = vmatpush.msra.mxu0 0.0
        %449 = vmatpush.msra.mxu0 0.0
        %450 = vmatpush.msra.mxu0 0.0
        %451 = vmatpush.msra.mxu0 0.0
        %452 = vmatpush.msra.mxu0 0.0
        %453 = vmatpush.msra.mxu0 0.0
        %454 = vmatpush.msra.mxu0 0.0
        %455 = vmatpush.msra.mxu0 0.0
        %456 = vmatpush.msra.mxu0 0.0
        %457 = vmatpush.msra.mxu0 0.0
        %458 = vmatpush.msra.mxu0 0.0
        %459 = vmatpush.msra.mxu0 0.0
        %v460 = vand.u32 %v279, 4294901760
        %461 = vmatpush.msra.mxu0 %v460
        %v462 = vand.u32 %v278, 4294901760
        %463 = vmatpush.msra.mxu0 %v462
        %v464 = vand.u32 %v277, 4294901760
        %465 = vmatpush.msra.mxu0 %v464
        %v466 = vand.u32 %v276, 4294901760
        %467 = vmatpush.msra.mxu0 %v466
        %v468 = vand.u32 %v286, 4294901760
        %469 = vmatmul.f32.gmra.mxu0 %v468
        %v470 = vpop.f32.mrf.mxu0
        %v471 = vadd.f32 %v446, %v470
        %472 = vdwg.mxu0
        %v473 = vld [vmem:[#allocation7] sm:$0xff]
        %v474 = vld [vmem:[#allocation7 + $0x8] sm:$0xff]
        %v475 = vld [vmem:[#allocation7 + $0x10] sm:$0xff]
        %v476 = vld [vmem:[#allocation7 + $0x18] sm:$0xff]
        %478 = vrot.lane.b32.xlu0 %v471, 96
        %v479 = vpop.permute.xlu0 %478
        %vm480 = vcmask 64512
        %v481 = vsel %vm480, %v471, 0
        %v483 = vsel %vm480, %v479, 0
        %485 = vmatpush.xpose.msra.mxu0 0.0
        %486 = vmatpush.xpose.msra.mxu0 0.0
        %487 = vmatpush.xpose.msra.mxu0 0.0
        %488 = vmatpush.xpose.msra.mxu0 0.0
        %489 = vmatpush.xpose.msra.mxu0 0.0
        %490 = vmatpush.xpose.msra.mxu0 0.0
        %491 = vmatpush.xpose.msra.mxu0 0.0
        %492 = vmatpush.xpose.msra.mxu0 0.0
        %493 = vmatpush.xpose.msra.mxu0 0.0
        %494 = vmatpush.xpose.msra.mxu0 0.0
        %495 = vmatpush.xpose.msra.mxu0 0.0
        %496 = vmatpush.xpose.msra.mxu0 0.0
        %497 = vmatpush.xpose.msra.mxu0 0.0
        %498 = vmatpush.xpose.msra.mxu0 0.0
        %499 = vmatpush.xpose.msra.mxu0 0.0
        %v500 = vand.u32 %v483, 4294901760
        %501 = vmatpush.xpose.msra.mxu0 %v500
        %v502 = vand.u32 %v481, 4294901760
        %v503 = vsub.f32 %v481, %v502
        %v504 = vand.u32 %v503, 4294901760
        %v505 = vsub.f32 %v503, %v504
        %v506 = vand.u32 %v505, 4294901760
        %507 = vmatmul.f32.gmra.mxu0 %v506
        %v508 = vpop.f32.mrf.mxu0
        %v509 = vadd.f32 0.0, %v508
        %510 = vdwg.mxu0
        %511 = vmatpush.xpose.msra.mxu0 0.0
        %512 = vmatpush.xpose.msra.mxu0 0.0
        %513 = vmatpush.xpose.msra.mxu0 0.0
        %514 = vmatpush.xpose.msra.mxu0 0.0
        %515 = vmatpush.xpose.msra.mxu0 0.0
        %516 = vmatpush.xpose.msra.mxu0 0.0
        %517 = vmatpush.xpose.msra.mxu0 0.0
        %518 = vmatpush.xpose.msra.mxu0 0.0
        %519 = vmatpush.xpose.msra.mxu0 0.0
        %520 = vmatpush.xpose.msra.mxu0 0.0
        %521 = vmatpush.xpose.msra.mxu0 0.0
        %522 = vmatpush.xpose.msra.mxu0 0.0
        %523 = vmatpush.xpose.msra.mxu0 0.0
        %524 = vmatpush.xpose.msra.mxu0 0.0
        %525 = vmatpush.xpose.msra.mxu0 0.0
        %v526 = vand.u32 %v483, 4294901760
        %v527 = vsub.f32 %v483, %v526
        %v528 = vand.u32 %v527, 4294901760
        %v529 = vsub.f32 %v527, %v528
        %v530 = vand.u32 %v529, 4294901760
        %531 = vmatpush.xpose.msra.mxu0 %v530
        %v532 = vand.u32 %v481, 4294901760
        %533 = vmatmul.f32.gmra.mxu0 %v532
        %v534 = vpop.f32.mrf.mxu0
        %v535 = vadd.f32 %v509, %v534
        %536 = vdwg.mxu0
        %537 = vmatpush.xpose.msra.mxu0 0.0
        %538 = vmatpush.xpose.msra.mxu0 0.0
        %539 = vmatpush.xpose.msra.mxu0 0.0
        %540 = vmatpush.xpose.msra.mxu0 0.0
        %541 = vmatpush.xpose.msra.mxu0 0.0
        %542 = vmatpush.xpose.msra.mxu0 0.0
        %543 = vmatpush.xpose.msra.mxu0 0.0
        %544 = vmatpush.xpose.msra.mxu0 0.0
        %545 = vmatpush.xpose.msra.mxu0 0.0
        %546 = vmatpush.xpose.msra.mxu0 0.0
        %547 = vmatpush.xpose.msra.mxu0 0.0
        %548 = vmatpush.xpose.msra.mxu0 0.0
        %549 = vmatpush.xpose.msra.mxu0 0.0
        %550 = vmatpush.xpose.msra.mxu0 0.0
        %551 = vmatpush.xpose.msra.mxu0 0.0
        %v552 = vand.u32 %v483, 4294901760
        %v553 = vsub.f32 %v483, %v552
        %554 = vmatpush.xpose.msra.mxu0 %v553
        %v555 = vand.u32 %v481, 4294901760
        %v556 = vsub.f32 %v481, %v555
        %557 = vmatmul.f32.gmra.mxu0 %v556
        %v558 = vpop.f32.mrf.mxu0
        %v559 = vadd.f32 %v535, %v558
        %560 = vdwg.mxu0
        %561 = vmatpush.xpose.msra.mxu0 0.0
        %562 = vmatpush.xpose.msra.mxu0 0.0
        %563 = vmatpush.xpose.msra.mxu0 0.0
        %564 = vmatpush.xpose.msra.mxu0 0.0
        %565 = vmatpush.xpose.msra.mxu0 0.0
        %566 = vmatpush.xpose.msra.mxu0 0.0
        %567 = vmatpush.xpose.msra.mxu0 0.0
        %568 = vmatpush.xpose.msra.mxu0 0.0
        %569 = vmatpush.xpose.msra.mxu0 0.0
        %570 = vmatpush.xpose.msra.mxu0 0.0
        %571 = vmatpush.xpose.msra.mxu0 0.0
        %572 = vmatpush.xpose.msra.mxu0 0.0
        %573 = vmatpush.xpose.msra.mxu0 0.0
        %574 = vmatpush.xpose.msra.mxu0 0.0
        %575 = vmatpush.xpose.msra.mxu0 0.0
        %v576 = vand.u32 %v483, 4294901760
        %577 = vmatpush.xpose.msra.mxu0 %v576
        %v578 = vand.u32 %v481, 4294901760
        %v579 = vsub.f32 %v481, %v578
        %v580 = vand.u32 %v579, 4294901760
        %581 = vmatmul.f32.gmra.mxu0 %v580
        %v582 = vpop.f32.mrf.mxu0
        %v583 = vadd.f32 %v559, %v582
        %584 = vdwg.mxu0
        %585 = vmatpush.xpose.msra.mxu0 0.0
        %586 = vmatpush.xpose.msra.mxu0 0.0
        %587 = vmatpush.xpose.msra.mxu0 0.0
        %588 = vmatpush.xpose.msra.mxu0 0.0
        %589 = vmatpush.xpose.msra.mxu0 0.0
        %590 = vmatpush.xpose.msra.mxu0 0.0
        %591 = vmatpush.xpose.msra.mxu0 0.0
        %592 = vmatpush.xpose.msra.mxu0 0.0
        %593 = vmatpush.xpose.msra.mxu0 0.0
        %594 = vmatpush.xpose.msra.mxu0 0.0
        %595 = vmatpush.xpose.msra.mxu0 0.0
        %596 = vmatpush.xpose.msra.mxu0 0.0
        %597 = vmatpush.xpose.msra.mxu0 0.0
        %598 = vmatpush.xpose.msra.mxu0 0.0
        %599 = vmatpush.xpose.msra.mxu0 0.0
        %v600 = vand.u32 %v483, 4294901760
        %v601 = vsub.f32 %v483, %v600
        %v602 = vand.u32 %v601, 4294901760
        %603 = vmatpush.xpose.msra.mxu0 %v602
        %v604 = vand.u32 %v481, 4294901760
        %605 = vmatmul.f32.gmra.mxu0 %v604
        %v606 = vpop.f32.mrf.mxu0
        %v607 = vadd.f32 %v583, %v606
        %608 = vdwg.mxu0
        %609 = vmatpush.xpose.msra.mxu0 0.0
        %610 = vmatpush.xpose.msra.mxu0 0.0
        %611 = vmatpush.xpose.msra.mxu0 0.0
        %612 = vmatpush.xpose.msra.mxu0 0.0
        %613 = vmatpush.xpose.msra.mxu0 0.0
        %614 = vmatpush.xpose.msra.mxu0 0.0
        %615 = vmatpush.xpose.msra.mxu0 0.0
        %616 = vmatpush.xpose.msra.mxu0 0.0
        %617 = vmatpush.xpose.msra.mxu0 0.0
        %618 = vmatpush.xpose.msra.mxu0 0.0
        %619 = vmatpush.xpose.msra.mxu0 0.0
        %620 = vmatpush.xpose.msra.mxu0 0.0
        %621 = vmatpush.xpose.msra.mxu0 0.0
        %622 = vmatpush.xpose.msra.mxu0 0.0
        %623 = vmatpush.xpose.msra.mxu0 0.0
        %v624 = vand.u32 %v483, 4294901760
        %625 = vmatpush.xpose.msra.mxu0 %v624
        %v626 = vand.u32 %v481, 4294901760
        %627 = vmatmul.f32.gmra.mxu0 %v626
        %v628 = vpop.f32.mrf.mxu0
        %v629 = vadd.f32 %v607, %v628
        %630 = vdwg.mxu0
        %v631 = vmul.f32 %v629, 0.35355338
        %v632 = vsel %vm480, %v631, -inf
        %633 = vmax.xlane.f32.xlu0 %v632
        %v634 = vpop.xlane.xlu0 %633
        %v635 = vsub.f32 %v631, %v634
        %v636 = vmul.f32 %v635, 1.442695
        %v637 = vpow.pop %v636
        %v638 = vsel %vm480, %v637, 0.0
        %639 = vadd.xlane.f32.xlu0 %v638
        %v640 = vpop.xlane.xlu0 %639
        %v641 = vrcp.pop %v640
        %v642 = vmul.f32 %v640, %v641
        %v643 = vsub.f32 1.0, %v642
        %v644 = vmul.f32 %v641, %v643
        %v645 = vadd.f32 %v641, %v644
        %vm646 = vweird.f32 %v640
        %vm647 = vweird.f32 %v641
        %vm648 = vmor %vm646, %vm647
        %v649 = vsel %vm648, %v641, %v645
        %v650 = vand.u32 2147483647, %v640
        %vm651 = vcmp.eq.f32.partialorder %v650, 8.507059e+37
        %v652 = vand.u32 %v640, 2147483648
        %v653 = vor.u32 1.1754944e-38, %v652
        %v654 = vsel %vm651, %v653, %v649
        %v655 = vmul.f32 %v637, %v654
        %656 = vrot.lane.b32.xlu0 %v471, 64
        %v657 = vpop.permute.xlu0 %656
        %v658 = vsel %vm480, %v657, 0
        %660 = vmatpush.msra.mxu0 0.0
        %661 = vmatpush.msra.mxu0 0.0
        %662 = vmatpush.msra.mxu0 0.0
        %663 = vmatpush.msra.mxu0 0.0
        %664 = vmatpush.msra.mxu0 0.0
        %665 = vmatpush.msra.mxu0 0.0
        %666 = vmatpush.msra.mxu0 0.0
        %667 = vmatpush.msra.mxu0 0.0
        %668 = vmatpush.msra.mxu0 0.0
        %669 = vmatpush.msra.mxu0 0.0
        %670 = vmatpush.msra.mxu0 0.0
        %671 = vmatpush.msra.mxu0 0.0
        %672 = vmatpush.msra.mxu0 0.0
        %673 = vmatpush.msra.mxu0 0.0
        %674 = vmatpush.msra.mxu0 0.0
        %v675 = vand.u32 %v473, 4294901760
        %676 = vmatpush.msra.mxu0 %v675
        %v677 = vand.u32 %v658, 4294901760
        %v678 = vsub.f32 %v658, %v677
        %v679 = vand.u32 %v678, 4294901760
        %v680 = vsub.f32 %v678, %v679
        %v681 = vand.u32 %v680, 4294901760
        %682 = vmatmul.f32.gmra.mxu0 %v681
        %v683 = vpop.f32.mrf.mxu0
        %v684 = vadd.f32 0.0, %v683
        %685 = vdwg.mxu0
        %686 = vmatpush.msra.mxu0 0.0
        %687 = vmatpush.msra.mxu0 0.0
        %688 = vmatpush.msra.mxu0 0.0
        %689 = vmatpush.msra.mxu0 0.0
        %690 = vmatpush.msra.mxu0 0.0
        %691 = vmatpush.msra.mxu0 0.0
        %692 = vmatpush.msra.mxu0 0.0
        %693 = vmatpush.msra.mxu0 0.0
        %694 = vmatpush.msra.mxu0 0.0
        %695 = vmatpush.msra.mxu0 0.0
        %696 = vmatpush.msra.mxu0 0.0
        %697 = vmatpush.msra.mxu0 0.0
        %698 = vmatpush.msra.mxu0 0.0
        %699 = vmatpush.msra.mxu0 0.0
        %700 = vmatpush.msra.mxu0 0.0
        %v701 = vand.u32 %v473, 4294901760
        %v702 = vsub.f32 %v473, %v701
        %v703 = vand.u32 %v702, 4294901760
        %v704 = vsub.f32 %v702, %v703
        %v705 = vand.u32 %v704, 4294901760
        %706 = vmatpush.msra.mxu0 %v705
        %v707 = vand.u32 %v658, 4294901760
        %708 = vmatmul.f32.gmra.mxu0 %v707
        %v709 = vpop.f32.mrf.mxu0
        %v710 = vadd.f32 %v684, %v709
        %711 = vdwg.mxu0
        %712 = vmatpush.msra.mxu0 0.0
        %713 = vmatpush.msra.mxu0 0.0
        %714 = vmatpush.msra.mxu0 0.0
        %715 = vmatpush.msra.mxu0 0.0
        %716 = vmatpush.msra.mxu0 0.0
        %717 = vmatpush.msra.mxu0 0.0
        %718 = vmatpush.msra.mxu0 0.0
        %719 = vmatpush.msra.mxu0 0.0
        %720 = vmatpush.msra.mxu0 0.0
        %721 = vmatpush.msra.mxu0 0.0
        %722 = vmatpush.msra.mxu0 0.0
        %723 = vmatpush.msra.mxu0 0.0
        %724 = vmatpush.msra.mxu0 0.0
        %725 = vmatpush.msra.mxu0 0.0
        %726 = vmatpush.msra.mxu0 0.0
        %v727 = vand.u32 %v473, 4294901760
        %v728 = vsub.f32 %v473, %v727
        %729 = vmatpush.msra.mxu0 %v728
        %v730 = vand.u32 %v658, 4294901760
        %v731 = vsub.f32 %v658, %v730
        %732 = vmatmul.f32.gmra.mxu0 %v731
        %v733 = vpop.f32.mrf.mxu0
        %v734 = vadd.f32 %v710, %v733
        %735 = vdwg.mxu0
        %736 = vmatpush.msra.mxu0 0.0
        %737 = vmatpush.msra.mxu0 0.0
        %738 = vmatpush.msra.mxu0 0.0
        %739 = vmatpush.msra.mxu0 0.0
        %740 = vmatpush.msra.mxu0 0.0
        %741 = vmatpush.msra.mxu0 0.0
        %742 = vmatpush.msra.mxu0 0.0
        %743 = vmatpush.msra.mxu0 0.0
        %744 = vmatpush.msra.mxu0 0.0
        %745 = vmatpush.msra.mxu0 0.0
        %746 = vmatpush.msra.mxu0 0.0
        %747 = vmatpush.msra.mxu0 0.0
        %748 = vmatpush.msra.mxu0 0.0
        %749 = vmatpush.msra.mxu0 0.0
        %750 = vmatpush.msra.mxu0 0.0
        %v751 = vand.u32 %v473, 4294901760
        %752 = vmatpush.msra.mxu0 %v751
        %v753 = vand.u32 %v658, 4294901760
        %v754 = vsub.f32 %v658, %v753
        %v755 = vand.u32 %v754, 4294901760
        %756 = vmatmul.f32.gmra.mxu0 %v755
        %v757 = vpop.f32.mrf.mxu0
        %v758 = vadd.f32 %v734, %v757
        %759 = vdwg.mxu0
        %760 = vmatpush.msra.mxu0 0.0
        %761 = vmatpush.msra.mxu0 0.0
        %762 = vmatpush.msra.mxu0 0.0
        %763 = vmatpush.msra.mxu0 0.0
        %764 = vmatpush.msra.mxu0 0.0
        %765 = vmatpush.msra.mxu0 0.0
        %766 = vmatpush.msra.mxu0 0.0
        %767 = vmatpush.msra.mxu0 0.0
        %768 = vmatpush.msra.mxu0 0.0
        %769 = vmatpush.msra.mxu0 0.0
        %770 = vmatpush.msra.mxu0 0.0
        %771 = vmatpush.msra.mxu0 0.0
        %772 = vmatpush.msra.mxu0 0.0
        %773 = vmatpush.msra.mxu0 0.0
        %774 = vmatpush.msra.mxu0 0.0
        %v775 = vand.u32 %v473, 4294901760
        %v776 = vsub.f32 %v473, %v775
        %v777 = vand.u32 %v776, 4294901760
        %778 = vmatpush.msra.mxu0 %v777
        %v779 = vand.u32 %v658, 4294901760
        %780 = vmatmul.f32.gmra.mxu0 %v779
        %v781 = vpop.f32.mrf.mxu0
        %v782 = vadd.f32 %v758, %v781
        %783 = vdwg.mxu0
        %784 = vmatpush.msra.mxu0 0.0
        %785 = vmatpush.msra.mxu0 0.0
        %786 = vmatpush.msra.mxu0 0.0
        %787 = vmatpush.msra.mxu0 0.0
        %788 = vmatpush.msra.mxu0 0.0
        %789 = vmatpush.msra.mxu0 0.0
        %790 = vmatpush.msra.mxu0 0.0
        %791 = vmatpush.msra.mxu0 0.0
        %792 = vmatpush.msra.mxu0 0.0
        %793 = vmatpush.msra.mxu0 0.0
        %794 = vmatpush.msra.mxu0 0.0
        %795 = vmatpush.msra.mxu0 0.0
        %796 = vmatpush.msra.mxu0 0.0
        %797 = vmatpush.msra.mxu0 0.0
        %798 = vmatpush.msra.mxu0 0.0
        %v799 = vand.u32 %v473, 4294901760
        %800 = vmatpush.msra.mxu0 %v799
        %v801 = vand.u32 %v658, 4294901760
        %802 = vmatmul.f32.gmra.mxu0 %v801
        %v803 = vpop.f32.mrf.mxu0
        %v804 = vadd.f32 %v782, %v803
        %805 = vdwg.mxu0
        %806 = vrot.lane.b32.xlu0 %v471, 120
        %v807 = vpop.permute.xlu0 %806
        %808 = vrot.lane.b32.xlu0 %v471, 88
        %v809 = vpop.permute.xlu0 %808
        %v810 = vsel %vm480, %v807, 0
        %v812 = vsel %vm480, %v809, 0
        %814 = vmatpush.xpose.msra.mxu0 0.0
        %815 = vmatpush.xpose.msra.mxu0 0.0
        %816 = vmatpush.xpose.msra.mxu0 0.0
        %817 = vmatpush.xpose.msra.mxu0 0.0
        %818 = vmatpush.xpose.msra.mxu0 0.0
        %819 = vmatpush.xpose.msra.mxu0 0.0
        %820 = vmatpush.xpose.msra.mxu0 0.0
        %821 = vmatpush.xpose.msra.mxu0 0.0
        %822 = vmatpush.xpose.msra.mxu0 0.0
        %823 = vmatpush.xpose.msra.mxu0 0.0
        %824 = vmatpush.xpose.msra.mxu0 0.0
        %825 = vmatpush.xpose.msra.mxu0 0.0
        %826 = vmatpush.xpose.msra.mxu0 0.0
        %827 = vmatpush.xpose.msra.mxu0 0.0
        %828 = vmatpush.xpose.msra.mxu0 0.0
        %v829 = vand.u32 %v812, 4294901760
        %830 = vmatpush.xpose.msra.mxu0 %v829
        %v831 = vand.u32 %v810, 4294901760
        %v832 = vsub.f32 %v810, %v831
        %v833 = vand.u32 %v832, 4294901760
        %v834 = vsub.f32 %v832, %v833
        %v835 = vand.u32 %v834, 4294901760
        %836 = vmatmul.f32.gmra.mxu0 %v835
        %v837 = vpop.f32.mrf.mxu0
        %v838 = vadd.f32 0.0, %v837
        %839 = vdwg.mxu0
        %840 = vmatpush.xpose.msra.mxu0 0.0
        %841 = vmatpush.xpose.msra.mxu0 0.0
        %842 = vmatpush.xpose.msra.mxu0 0.0
        %843 = vmatpush.xpose.msra.mxu0 0.0
        %844 = vmatpush.xpose.msra.mxu0 0.0
        %845 = vmatpush.xpose.msra.mxu0 0.0
        %846 = vmatpush.xpose.msra.mxu0 0.0
        %847 = vmatpush.xpose.msra.mxu0 0.0
        %848 = vmatpush.xpose.msra.mxu0 0.0
        %849 = vmatpush.xpose.msra.mxu0 0.0
        %850 = vmatpush.xpose.msra.mxu0 0.0
        %851 = vmatpush.xpose.msra.mxu0 0.0
        %852 = vmatpush.xpose.msra.mxu0 0.0
        %853 = vmatpush.xpose.msra.mxu0 0.0
        %854 = vmatpush.xpose.msra.mxu0 0.0
        %v855 = vand.u32 %v812, 4294901760
        %v856 = vsub.f32 %v812, %v855
        %v857 = vand.u32 %v856, 4294901760
        %v858 = vsub.f32 %v856, %v857
        %v859 = vand.u32 %v858, 4294901760
        %860 = vmatpush.xpose.msra.mxu0 %v859
        %v861 = vand.u32 %v810, 4294901760
        %862 = vmatmul.f32.gmra.mxu0 %v861
        %v863 = vpop.f32.mrf.mxu0
        %v864 = vadd.f32 %v838, %v863
        %865 = vdwg.mxu0
        %866 = vmatpush.xpose.msra.mxu0 0.0
        %867 = vmatpush.xpose.msra.mxu0 0.0
        %868 = vmatpush.xpose.msra.mxu0 0.0
        %869 = vmatpush.xpose.msra.mxu0 0.0
        %870 = vmatpush.xpose.msra.mxu0 0.0
        %871 = vmatpush.xpose.msra.mxu0 0.0
        %872 = vmatpush.xpose.msra.mxu0 0.0
        %873 = vmatpush.xpose.msra.mxu0 0.0
        %874 = vmatpush.xpose.msra.mxu0 0.0
        %875 = vmatpush.xpose.msra.mxu0 0.0
        %876 = vmatpush.xpose.msra.mxu0 0.0
        %877 = vmatpush.xpose.msra.mxu0 0.0
        %878 = vmatpush.xpose.msra.mxu0 0.0
        %879 = vmatpush.xpose.msra.mxu0 0.0
        %880 = vmatpush.xpose.msra.mxu0 0.0
        %v881 = vand.u32 %v812, 4294901760
        %v882 = vsub.f32 %v812, %v881
        %883 = vmatpush.xpose.msra.mxu0 %v882
        %v884 = vand.u32 %v810, 4294901760
        %v885 = vsub.f32 %v810, %v884
        %886 = vmatmul.f32.gmra.mxu0 %v885
        %v887 = vpop.f32.mrf.mxu0
        %v888 = vadd.f32 %v864, %v887
        %889 = vdwg.mxu0
        %890 = vmatpush.xpose.msra.mxu0 0.0
        %891 = vmatpush.xpose.msra.mxu0 0.0
        %892 = vmatpush.xpose.msra.mxu0 0.0
        %893 = vmatpush.xpose.msra.mxu0 0.0
        %894 = vmatpush.xpose.msra.mxu0 0.0
        %895 = vmatpush.xpose.msra.mxu0 0.0
        %896 = vmatpush.xpose.msra.mxu0 0.0
        %897 = vmatpush.xpose.msra.mxu0 0.0
        %898 = vmatpush.xpose.msra.mxu0 0.0
        %899 = vmatpush.xpose.msra.mxu0 0.0
        %900 = vmatpush.xpose.msra.mxu0 0.0
        %901 = vmatpush.xpose.msra.mxu0 0.0
        %902 = vmatpush.xpose.msra.mxu0 0.0
        %903 = vmatpush.xpose.msra.mxu0 0.0
        %904 = vmatpush.xpose.msra.mxu0 0.0
        %v905 = vand.u32 %v812, 4294901760
        %906 = vmatpush.xpose.msra.mxu0 %v905
        %v907 = vand.u32 %v810, 4294901760
        %v908 = vsub.f32 %v810, %v907
        %v909 = vand.u32 %v908, 4294901760
        %910 = vmatmul.f32.gmra.mxu0 %v909
        %v911 = vpop.f32.mrf.mxu0
        %v912 = vadd.f32 %v888, %v911
        %913 = vdwg.mxu0
        %914 = vmatpush.xpose.msra.mxu0 0.0
        %915 = vmatpush.xpose.msra.mxu0 0.0
        %916 = vmatpush.xpose.msra.mxu0 0.0
        %917 = vmatpush.xpose.msra.mxu0 0.0
        %918 = vmatpush.xpose.msra.mxu0 0.0
        %919 = vmatpush.xpose.msra.mxu0 0.0
        %920 = vmatpush.xpose.msra.mxu0 0.0
        %921 = vmatpush.xpose.msra.mxu0 0.0
        %922 = vmatpush.xpose.msra.mxu0 0.0
        %923 = vmatpush.xpose.msra.mxu0 0.0
        %924 = vmatpush.xpose.msra.mxu0 0.0
        %925 = vmatpush.xpose.msra.mxu0 0.0
        %926 = vmatpush.xpose.msra.mxu0 0.0
        %927 = vmatpush.xpose.msra.mxu0 0.0
        %928 = vmatpush.xpose.msra.mxu0 0.0
        %v929 = vand.u32 %v812, 4294901760
        %v930 = vsub.f32 %v812, %v929
        %v931 = vand.u32 %v930, 4294901760
        %932 = vmatpush.xpose.msra.mxu0 %v931
        %v933 = vand.u32 %v810, 4294901760
        %934 = vmatmul.f32.gmra.mxu0 %v933
        %v935 = vpop.f32.mrf.mxu0
        %v936 = vadd.f32 %v912, %v935
        %937 = vdwg.mxu0
        %938 = vmatpush.xpose.msra.mxu0 0.0
        %939 = vmatpush.xpose.msra.mxu0 0.0
        %940 = vmatpush.xpose.msra.mxu0 0.0
        %941 = vmatpush.xpose.msra.mxu0 0.0
        %942 = vmatpush.xpose.msra.mxu0 0.0
        %943 = vmatpush.xpose.msra.mxu0 0.0
        %944 = vmatpush.xpose.msra.mxu0 0.0
        %945 = vmatpush.xpose.msra.mxu0 0.0
        %946 = vmatpush.xpose.msra.mxu0 0.0
        %947 = vmatpush.xpose.msra.mxu0 0.0
        %948 = vmatpush.xpose.msra.mxu0 0.0
        %949 = vmatpush.xpose.msra.mxu0 0.0
        %950 = vmatpush.xpose.msra.mxu0 0.0
        %951 = vmatpush.xpose.msra.mxu0 0.0
        %952 = vmatpush.xpose.msra.mxu0 0.0
        %v953 = vand.u32 %v812, 4294901760
        %954 = vmatpush.xpose.msra.mxu0 %v953
        %v955 = vand.u32 %v810, 4294901760
        %956 = vmatmul.f32.gmra.mxu0 %v955
        %v957 = vpop.f32.mrf.mxu0
        %v958 = vadd.f32 %v936, %v957
        %959 = vdwg.mxu0
        %v960 = vmul.f32 %v958, 0.35355338
        %v961 = vsel %vm480, %v960, -inf
        %962 = vmax.xlane.f32.xlu0 %v961
        %v963 = vpop.xlane.xlu0 %962
        %v964 = vsub.f32 %v960, %v963
        %v965 = vmul.f32 %v964, 1.442695
        %v966 = vpow.pop %v965
        %v967 = vsel %vm480, %v966, 0.0
        %968 = vadd.xlane.f32.xlu0 %v967
        %v969 = vpop.xlane.xlu0 %968
        %v970 = vrcp.pop %v969
        %v971 = vmul.f32 %v969, %v970
        %v972 = vsub.f32 1.0, %v971
        %v973 = vmul.f32 %v970, %v972
        %v974 = vadd.f32 %v970, %v973
        %vm975 = vweird.f32 %v969
        %vm976 = vweird.f32 %v970
        %vm977 = vmor %vm975, %vm976
        %v978 = vsel %vm977, %v970, %v974
        %v979 = vand.u32 2147483647, %v969
        %vm980 = vcmp.eq.f32.partialorder %v979, 8.507059e+37
        %v981 = vand.u32 %v969, 2147483648
        %v982 = vor.u32 1.1754944e-38, %v981
        %v983 = vsel %vm980, %v982, %v978
        %v984 = vmul.f32 %v966, %v983
        %985 = vrot.lane.b32.xlu0 %v471, 56
        %v986 = vpop.permute.xlu0 %985
        %v987 = vsel %vm480, %v986, 0
        %989 = vmatpush.msra.mxu0 0.0
        %990 = vmatpush.msra.mxu0 0.0
        %991 = vmatpush.msra.mxu0 0.0
        %992 = vmatpush.msra.mxu0 0.0
        %993 = vmatpush.msra.mxu0 0.0
        %994 = vmatpush.msra.mxu0 0.0
        %995 = vmatpush.msra.mxu0 0.0
        %996 = vmatpush.msra.mxu0 0.0
        %997 = vmatpush.msra.mxu0 0.0
        %998 = vmatpush.msra.mxu0 0.0
        %999 = vmatpush.msra.mxu0 0.0
        %1000 = vmatpush.msra.mxu0 0.0
        %1001 = vmatpush.msra.mxu0 0.0
        %1002 = vmatpush.msra.mxu0 0.0
        %1003 = vmatpush.msra.mxu0 0.0
        %v1004 = vand.u32 %v474, 4294901760
        %1005 = vmatpush.msra.mxu0 %v1004
        %v1006 = vand.u32 %v987, 4294901760
        %v1007 = vsub.f32 %v987, %v1006
        %v1008 = vand.u32 %v1007, 4294901760
        %v1009 = vsub.f32 %v1007, %v1008
        %v1010 = vand.u32 %v1009, 4294901760
        %1011 = vmatmul.f32.gmra.mxu0 %v1010
        %v1012 = vpop.f32.mrf.mxu0
        %v1013 = vadd.f32 0.0, %v1012
        %1014 = vdwg.mxu0
        %1015 = vmatpush.msra.mxu0 0.0
        %1016 = vmatpush.msra.mxu0 0.0
        %1017 = vmatpush.msra.mxu0 0.0
        %1018 = vmatpush.msra.mxu0 0.0
        %1019 = vmatpush.msra.mxu0 0.0
        %1020 = vmatpush.msra.mxu0 0.0
        %1021 = vmatpush.msra.mxu0 0.0
        %1022 = vmatpush.msra.mxu0 0.0
        %1023 = vmatpush.msra.mxu0 0.0
        %1024 = vmatpush.msra.mxu0 0.0
        %1025 = vmatpush.msra.mxu0 0.0
        %1026 = vmatpush.msra.mxu0 0.0
        %1027 = vmatpush.msra.mxu0 0.0
        %1028 = vmatpush.msra.mxu0 0.0
        %1029 = vmatpush.msra.mxu0 0.0
        %v1030 = vand.u32 %v474, 4294901760
        %v1031 = vsub.f32 %v474, %v1030
        %v1032 = vand.u32 %v1031, 4294901760
        %v1033 = vsub.f32 %v1031, %v1032
        %v1034 = vand.u32 %v1033, 4294901760
        %1035 = vmatpush.msra.mxu0 %v1034
        %v1036 = vand.u32 %v987, 4294901760
        %1037 = vmatmul.f32.gmra.mxu0 %v1036
        %v1038 = vpop.f32.mrf.mxu0
        %v1039 = vadd.f32 %v1013, %v1038
        %1040 = vdwg.mxu0
        %1041 = vmatpush.msra.mxu0 0.0
        %1042 = vmatpush.msra.mxu0 0.0
        %1043 = vmatpush.msra.mxu0 0.0
        %1044 = vmatpush.msra.mxu0 0.0
        %1045 = vmatpush.msra.mxu0 0.0
        %1046 = vmatpush.msra.mxu0 0.0
        %1047 = vmatpush.msra.mxu0 0.0
        %1048 = vmatpush.msra.mxu0 0.0
        %1049 = vmatpush.msra.mxu0 0.0
        %1050 = vmatpush.msra.mxu0 0.0
        %1051 = vmatpush.msra.mxu0 0.0
        %1052 = vmatpush.msra.mxu0 0.0
        %1053 = vmatpush.msra.mxu0 0.0
        %1054 = vmatpush.msra.mxu0 0.0
        %1055 = vmatpush.msra.mxu0 0.0
        %v1056 = vand.u32 %v474, 4294901760
        %v1057 = vsub.f32 %v474, %v1056
        %1058 = vmatpush.msra.mxu0 %v1057
        %v1059 = vand.u32 %v987, 4294901760
        %v1060 = vsub.f32 %v987, %v1059
        %1061 = vmatmul.f32.gmra.mxu0 %v1060
        %v1062 = vpop.f32.mrf.mxu0
        %v1063 = vadd.f32 %v1039, %v1062
        %1064 = vdwg.mxu0
        %1065 = vmatpush.msra.mxu0 0.0
        %1066 = vmatpush.msra.mxu0 0.0
        %1067 = vmatpush.msra.mxu0 0.0
        %1068 = vmatpush.msra.mxu0 0.0
        %1069 = vmatpush.msra.mxu0 0.0
        %1070 = vmatpush.msra.mxu0 0.0
        %1071 = vmatpush.msra.mxu0 0.0
        %1072 = vmatpush.msra.mxu0 0.0
        %1073 = vmatpush.msra.mxu0 0.0
        %1074 = vmatpush.msra.mxu0 0.0
        %1075 = vmatpush.msra.mxu0 0.0
        %1076 = vmatpush.msra.mxu0 0.0
        %1077 = vmatpush.msra.mxu0 0.0
        %1078 = vmatpush.msra.mxu0 0.0
        %1079 = vmatpush.msra.mxu0 0.0
        %v1080 = vand.u32 %v474, 4294901760
        %1081 = vmatpush.msra.mxu0 %v1080
        %v1082 = vand.u32 %v987, 4294901760
        %v1083 = vsub.f32 %v987, %v1082
        %v1084 = vand.u32 %v1083, 4294901760
        %1085 = vmatmul.f32.gmra.mxu0 %v1084
        %v1086 = vpop.f32.mrf.mxu0
        %v1087 = vadd.f32 %v1063, %v1086
        %1088 = vdwg.mxu0
        %1089 = vmatpush.msra.mxu0 0.0
        %1090 = vmatpush.msra.mxu0 0.0
        %1091 = vmatpush.msra.mxu0 0.0
        %1092 = vmatpush.msra.mxu0 0.0
        %1093 = vmatpush.msra.mxu0 0.0
        %1094 = vmatpush.msra.mxu0 0.0
        %1095 = vmatpush.msra.mxu0 0.0
        %1096 = vmatpush.msra.mxu0 0.0
        %1097 = vmatpush.msra.mxu0 0.0
        %1098 = vmatpush.msra.mxu0 0.0
        %1099 = vmatpush.msra.mxu0 0.0
        %1100 = vmatpush.msra.mxu0 0.0
        %1101 = vmatpush.msra.mxu0 0.0
        %1102 = vmatpush.msra.mxu0 0.0
        %1103 = vmatpush.msra.mxu0 0.0
        %v1104 = vand.u32 %v474, 4294901760
        %v1105 = vsub.f32 %v474, %v1104
        %v1106 = vand.u32 %v1105, 4294901760
        %1107 = vmatpush.msra.mxu0 %v1106
        %v1108 = vand.u32 %v987, 4294901760
        %1109 = vmatmul.f32.gmra.mxu0 %v1108
        %v1110 = vpop.f32.mrf.mxu0
        %v1111 = vadd.f32 %v1087, %v1110
        %1112 = vdwg.mxu0
        %1113 = vmatpush.msra.mxu0 0.0
        %1114 = vmatpush.msra.mxu0 0.0
        %1115 = vmatpush.msra.mxu0 0.0
        %1116 = vmatpush.msra.mxu0 0.0
        %1117 = vmatpush.msra.mxu0 0.0
        %1118 = vmatpush.msra.mxu0 0.0
        %1119 = vmatpush.msra.mxu0 0.0
        %1120 = vmatpush.msra.mxu0 0.0
        %1121 = vmatpush.msra.mxu0 0.0
        %1122 = vmatpush.msra.mxu0 0.0
        %1123 = vmatpush.msra.mxu0 0.0
        %1124 = vmatpush.msra.mxu0 0.0
        %1125 = vmatpush.msra.mxu0 0.0
        %1126 = vmatpush.msra.mxu0 0.0
        %1127 = vmatpush.msra.mxu0 0.0
        %v1128 = vand.u32 %v474, 4294901760
        %1129 = vmatpush.msra.mxu0 %v1128
        %v1130 = vand.u32 %v987, 4294901760
        %1131 = vmatmul.f32.gmra.mxu0 %v1130
        %v1132 = vpop.f32.mrf.mxu0
        %v1133 = vadd.f32 %v1111, %v1132
        %1134 = vdwg.mxu0
        %v1136 = vsel %vm480, %v984, 0
        %1138 = vmatpush.msra.mxu0 0.0
        %1139 = vmatpush.msra.mxu0 0.0
        %1140 = vmatpush.msra.mxu0 0.0
        %1141 = vmatpush.msra.mxu0 0.0
        %1142 = vmatpush.msra.mxu0 0.0
        %1143 = vmatpush.msra.mxu0 0.0
        %1144 = vmatpush.msra.mxu0 0.0
        %1145 = vmatpush.msra.mxu0 0.0
        %1146 = vmatpush.msra.mxu0 0.0
        %1147 = vmatpush.msra.mxu0 0.0
        %1148 = vmatpush.msra.mxu0 0.0
        %1149 = vmatpush.msra.mxu0 0.0
        %1150 = vmatpush.msra.mxu0 0.0
        %1151 = vmatpush.msra.mxu0 0.0
        %1152 = vmatpush.msra.mxu0 0.0
        %v1153 = vand.u32 %v1133, 4294901760
        %1154 = vmatpush.msra.mxu0 %v1153
        %v1155 = vand.u32 %v1136, 4294901760
        %v1156 = vsub.f32 %v1136, %v1155
        %v1157 = vand.u32 %v1156, 4294901760
        %v1158 = vsub.f32 %v1156, %v1157
        %v1159 = vand.u32 %v1158, 4294901760
        %1160 = vmatmul.f32.gmra.mxu0 %v1159
        %v1161 = vpop.f32.mrf.mxu0
        %v1162 = vadd.f32 0.0, %v1161
        %1163 = vdwg.mxu0
        %1164 = vmatpush.msra.mxu0 0.0
        %1165 = vmatpush.msra.mxu0 0.0
        %1166 = vmatpush.msra.mxu0 0.0
        %1167 = vmatpush.msra.mxu0 0.0
        %1168 = vmatpush.msra.mxu0 0.0
        %1169 = vmatpush.msra.mxu0 0.0
        %1170 = vmatpush.msra.mxu0 0.0
        %1171 = vmatpush.msra.mxu0 0.0
        %1172 = vmatpush.msra.mxu0 0.0
        %1173 = vmatpush.msra.mxu0 0.0
        %1174 = vmatpush.msra.mxu0 0.0
        %1175 = vmatpush.msra.mxu0 0.0
        %1176 = vmatpush.msra.mxu0 0.0
        %1177 = vmatpush.msra.mxu0 0.0
        %1178 = vmatpush.msra.mxu0 0.0
        %v1179 = vand.u32 %v1133, 4294901760
        %v1180 = vsub.f32 %v1133, %v1179
        %v1181 = vand.u32 %v1180, 4294901760
        %v1182 = vsub.f32 %v1180, %v1181
        %v1183 = vand.u32 %v1182, 4294901760
        %1184 = vmatpush.msra.mxu0 %v1183
        %v1185 = vand.u32 %v1136, 4294901760
        %1186 = vmatmul.f32.gmra.mxu0 %v1185
        %v1187 = vpop.f32.mrf.mxu0
        %v1188 = vadd.f32 %v1162, %v1187
        %1189 = vdwg.mxu0
        %1190 = vmatpush.msra.mxu0 0.0
        %1191 = vmatpush.msra.mxu0 0.0
        %1192 = vmatpush.msra.mxu0 0.0
        %1193 = vmatpush.msra.mxu0 0.0
        %1194 = vmatpush.msra.mxu0 0.0
        %1195 = vmatpush.msra.mxu0 0.0
        %1196 = vmatpush.msra.mxu0 0.0
        %1197 = vmatpush.msra.mxu0 0.0
        %1198 = vmatpush.msra.mxu0 0.0
        %1199 = vmatpush.msra.mxu0 0.0
        %1200 = vmatpush.msra.mxu0 0.0
        %1201 = vmatpush.msra.mxu0 0.0
        %1202 = vmatpush.msra.mxu0 0.0
        %1203 = vmatpush.msra.mxu0 0.0
        %1204 = vmatpush.msra.mxu0 0.0
        %v1205 = vand.u32 %v1133, 4294901760
        %v1206 = vsub.f32 %v1133, %v1205
        %1207 = vmatpush.msra.mxu0 %v1206
        %v1208 = vand.u32 %v1136, 4294901760
        %v1209 = vsub.f32 %v1136, %v1208
        %1210 = vmatmul.f32.gmra.mxu0 %v1209
        %v1211 = vpop.f32.mrf.mxu0
        %v1212 = vadd.f32 %v1188, %v1211
        %1213 = vdwg.mxu0
        %1214 = vmatpush.msra.mxu0 0.0
        %1215 = vmatpush.msra.mxu0 0.0
        %1216 = vmatpush.msra.mxu0 0.0
        %1217 = vmatpush.msra.mxu0 0.0
        %1218 = vmatpush.msra.mxu0 0.0
        %1219 = vmatpush.msra.mxu0 0.0
        %1220 = vmatpush.msra.mxu0 0.0
        %1221 = vmatpush.msra.mxu0 0.0
        %1222 = vmatpush.msra.mxu0 0.0
        %1223 = vmatpush.msra.mxu0 0.0
        %1224 = vmatpush.msra.mxu0 0.0
        %1225 = vmatpush.msra.mxu0 0.0
        %1226 = vmatpush.msra.mxu0 0.0
        %1227 = vmatpush.msra.mxu0 0.0
        %1228 = vmatpush.msra.mxu0 0.0
        %v1229 = vand.u32 %v1133, 4294901760
        %1230 = vmatpush.msra.mxu0 %v1229
        %v1231 = vand.u32 %v1136, 4294901760
        %v1232 = vsub.f32 %v1136, %v1231
        %v1233 = vand.u32 %v1232, 4294901760
        %1234 = vmatmul.f32.gmra.mxu0 %v1233
        %v1235 = vpop.f32.mrf.mxu0
        %v1236 = vadd.f32 %v1212, %v1235
        %1237 = vdwg.mxu0
        %1238 = vmatpush.msra.mxu0 0.0
        %1239 = vmatpush.msra.mxu0 0.0
        %1240 = vmatpush.msra.mxu0 0.0
        %1241 = vmatpush.msra.mxu0 0.0
        %1242 = vmatpush.msra.mxu0 0.0
        %1243 = vmatpush.msra.mxu0 0.0
        %1244 = vmatpush.msra.mxu0 0.0
        %1245 = vmatpush.msra.mxu0 0.0
        %1246 = vmatpush.msra.mxu0 0.0
        %1247 = vmatpush.msra.mxu0 0.0
        %1248 = vmatpush.msra.mxu0 0.0
        %1249 = vmatpush.msra.mxu0 0.0
        %1250 = vmatpush.msra.mxu0 0.0
        %1251 = vmatpush.msra.mxu0 0.0
        %1252 = vmatpush.msra.mxu0 0.0
        %v1253 = vand.u32 %v1133, 4294901760
        %v1254 = vsub.f32 %v1133, %v1253
        %v1255 = vand.u32 %v1254, 4294901760
        %1256 = vmatpush.msra.mxu0 %v1255
        %v1257 = vand.u32 %v1136, 4294901760
        %1258 = vmatmul.f32.gmra.mxu0 %v1257
        %v1259 = vpop.f32.mrf.mxu0
        %v1260 = vadd.f32 %v1236, %v1259
        %1261 = vdwg.mxu0
        %1262 = vmatpush.msra.mxu0 0.0
        %1263 = vmatpush.msra.mxu0 0.0
        %1264 = vmatpush.msra.mxu0 0.0
        %1265 = vmatpush.msra.mxu0 0.0
        %1266 = vmatpush.msra.mxu0 0.0
        %1267 = vmatpush.msra.mxu0 0.0
        %1268 = vmatpush.msra.mxu0 0.0
        %1269 = vmatpush.msra.mxu0 0.0
        %1270 = vmatpush.msra.mxu0 0.0
        %1271 = vmatpush.msra.mxu0 0.0
        %1272 = vmatpush.msra.mxu0 0.0
        %1273 = vmatpush.msra.mxu0 0.0
        %1274 = vmatpush.msra.mxu0 0.0
        %1275 = vmatpush.msra.mxu0 0.0
        %1276 = vmatpush.msra.mxu0 0.0
        %v1277 = vand.u32 %v1133, 4294901760
        %1278 = vmatpush.msra.mxu0 %v1277
        %v1279 = vand.u32 %v1136, 4294901760
        %1280 = vmatmul.f32.gmra.mxu0 %v1279
        %v1281 = vpop.f32.mrf.mxu0
        %v1282 = vadd.f32 %v1260, %v1281
        %1283 = vdwg.mxu0
        %v1285 = vsel %vm480, %v655, 0
        %1287 = vmatpush.msra.mxu0 0.0
        %1288 = vmatpush.msra.mxu0 0.0
        %1289 = vmatpush.msra.mxu0 0.0
        %1290 = vmatpush.msra.mxu0 0.0
        %1291 = vmatpush.msra.mxu0 0.0
        %1292 = vmatpush.msra.mxu0 0.0
        %1293 = vmatpush.msra.mxu0 0.0
        %1294 = vmatpush.msra.mxu0 0.0
        %1295 = vmatpush.msra.mxu0 0.0
        %1296 = vmatpush.msra.mxu0 0.0
        %1297 = vmatpush.msra.mxu0 0.0
        %1298 = vmatpush.msra.mxu0 0.0
        %1299 = vmatpush.msra.mxu0 0.0
        %1300 = vmatpush.msra.mxu0 0.0
        %1301 = vmatpush.msra.mxu0 0.0
        %v1302 = vand.u32 %v804, 4294901760
        %1303 = vmatpush.msra.mxu0 %v1302
        %v1304 = vand.u32 %v1285, 4294901760
        %v1305 = vsub.f32 %v1285, %v1304
        %v1306 = vand.u32 %v1305, 4294901760
        %v1307 = vsub.f32 %v1305, %v1306
        %v1308 = vand.u32 %v1307, 4294901760
        %1309 = vmatmul.f32.gmra.mxu0 %v1308
        %v1310 = vpop.f32.mrf.mxu0
        %v1311 = vadd.f32 %v1282, %v1310
        %1312 = vdwg.mxu0
        %1313 = vmatpush.msra.mxu0 0.0
        %1314 = vmatpush.msra.mxu0 0.0
        %1315 = vmatpush.msra.mxu0 0.0
        %1316 = vmatpush.msra.mxu0 0.0
        %1317 = vmatpush.msra.mxu0 0.0
        %1318 = vmatpush.msra.mxu0 0.0
        %1319 = vmatpush.msra.mxu0 0.0
        %1320 = vmatpush.msra.mxu0 0.0
        %1321 = vmatpush.msra.mxu0 0.0
        %1322 = vmatpush.msra.mxu0 0.0
        %1323 = vmatpush.msra.mxu0 0.0
        %1324 = vmatpush.msra.mxu0 0.0
        %1325 = vmatpush.msra.mxu0 0.0
        %1326 = vmatpush.msra.mxu0 0.0
        %1327 = vmatpush.msra.mxu0 0.0
        %v1328 = vand.u32 %v804, 4294901760
        %v1329 = vsub.f32 %v804, %v1328
        %v1330 = vand.u32 %v1329, 4294901760
        %v1331 = vsub.f32 %v1329, %v1330
        %v1332 = vand.u32 %v1331, 4294901760
        %1333 = vmatpush.msra.mxu0 %v1332
        %v1334 = vand.u32 %v1285, 4294901760
        %1335 = vmatmul.f32.gmra.mxu0 %v1334
        %v1336 = vpop.f32.mrf.mxu0
        %v1337 = vadd.f32 %v1311, %v1336
        %1338 = vdwg.mxu0
        %1339 = vmatpush.msra.mxu0 0.0
        %1340 = vmatpush.msra.mxu0 0.0
        %1341 = vmatpush.msra.mxu0 0.0
        %1342 = vmatpush.msra.mxu0 0.0
        %1343 = vmatpush.msra.mxu0 0.0
        %1344 = vmatpush.msra.mxu0 0.0
        %1345 = vmatpush.msra.mxu0 0.0
        %1346 = vmatpush.msra.mxu0 0.0
        %1347 = vmatpush.msra.mxu0 0.0
        %1348 = vmatpush.msra.mxu0 0.0
        %1349 = vmatpush.msra.mxu0 0.0
        %1350 = vmatpush.msra.mxu0 0.0
        %1351 = vmatpush.msra.mxu0 0.0
        %1352 = vmatpush.msra.mxu0 0.0
        %1353 = vmatpush.msra.mxu0 0.0
        %v1354 = vand.u32 %v804, 4294901760
        %v1355 = vsub.f32 %v804, %v1354
        %1356 = vmatpush.msra.mxu0 %v1355
        %v1357 = vand.u32 %v1285, 4294901760
        %v1358 = vsub.f32 %v1285, %v1357
        %1359 = vmatmul.f32.gmra.mxu0 %v1358
        %v1360 = vpop.f32.mrf.mxu0
        %v1361 = vadd.f32 %v1337, %v1360
        %1362 = vdwg.mxu0
        %1363 = vmatpush.msra.mxu0 0.0
        %1364 = vmatpush.msra.mxu0 0.0
        %1365 = vmatpush.msra.mxu0 0.0
        %1366 = vmatpush.msra.mxu0 0.0
        %1367 = vmatpush.msra.mxu0 0.0
        %1368 = vmatpush.msra.mxu0 0.0
        %1369 = vmatpush.msra.mxu0 0.0
        %1370 = vmatpush.msra.mxu0 0.0
        %1371 = vmatpush.msra.mxu0 0.0
        %1372 = vmatpush.msra.mxu0 0.0
        %1373 = vmatpush.msra.mxu0 0.0
        %1374 = vmatpush.msra.mxu0 0.0
        %1375 = vmatpush.msra.mxu0 0.0
        %1376 = vmatpush.msra.mxu0 0.0
        %1377 = vmatpush.msra.mxu0 0.0
        %v1378 = vand.u32 %v804, 4294901760
        %1379 = vmatpush.msra.mxu0 %v1378
        %v1380 = vand.u32 %v1285, 4294901760
        %v1381 = vsub.f32 %v1285, %v1380
        %v1382 = vand.u32 %v1381, 4294901760
        %1383 = vmatmul.f32.gmra.mxu0 %v1382
        %v1384 = vpop.f32.mrf.mxu0
        %v1385 = vadd.f32 %v1361, %v1384
        %1386 = vdwg.mxu0
        %1387 = vmatpush.msra.mxu0 0.0
        %1388 = vmatpush.msra.mxu0 0.0
        %1389 = vmatpush.msra.mxu0 0.0
        %1390 = vmatpush.msra.mxu0 0.0
        %1391 = vmatpush.msra.mxu0 0.0
        %1392 = vmatpush.msra.mxu0 0.0
        %1393 = vmatpush.msra.mxu0 0.0
        %1394 = vmatpush.msra.mxu0 0.0
        %1395 = vmatpush.msra.mxu0 0.0
        %1396 = vmatpush.msra.mxu0 0.0
        %1397 = vmatpush.msra.mxu0 0.0
        %1398 = vmatpush.msra.mxu0 0.0
        %1399 = vmatpush.msra.mxu0 0.0
        %1400 = vmatpush.msra.mxu0 0.0
        %1401 = vmatpush.msra.mxu0 0.0
        %v1402 = vand.u32 %v804, 4294901760
        %v1403 = vsub.f32 %v804, %v1402
        %v1404 = vand.u32 %v1403, 4294901760
        %1405 = vmatpush.msra.mxu0 %v1404
        %v1406 = vand.u32 %v1285, 4294901760
        %1407 = vmatmul.f32.gmra.mxu0 %v1406
        %v1408 = vpop.f32.mrf.mxu0
        %v1409 = vadd.f32 %v1385, %v1408
        %1410 = vdwg.mxu0
        %1411 = vmatpush.msra.mxu0 0.0
        %1412 = vmatpush.msra.mxu0 0.0
        %1413 = vmatpush.msra.mxu0 0.0
        %1414 = vmatpush.msra.mxu0 0.0
        %1415 = vmatpush.msra.mxu0 0.0
        %1416 = vmatpush.msra.mxu0 0.0
        %1417 = vmatpush.msra.mxu0 0.0
        %1418 = vmatpush.msra.mxu0 0.0
        %1419 = vmatpush.msra.mxu0 0.0
        %1420 = vmatpush.msra.mxu0 0.0
        %1421 = vmatpush.msra.mxu0 0.0
        %1422 = vmatpush.msra.mxu0 0.0
        %1423 = vmatpush.msra.mxu0 0.0
        %1424 = vmatpush.msra.mxu0 0.0
        %1425 = vmatpush.msra.mxu0 0.0
        %v1426 = vand.u32 %v804, 4294901760
        %1427 = vmatpush.msra.mxu0 %v1426
        %v1428 = vand.u32 %v1285, 4294901760
        %1429 = vmatmul.f32.gmra.mxu0 %v1428
        %v1430 = vpop.f32.mrf.mxu0
        %v1431 = vadd.f32 %v1409, %v1430
        %1432 = vdwg.mxu0
        %1433 = vrot.lane.b32.xlu0 %v471, 112
        %v1434 = vpop.permute.xlu0 %1433
        %1435 = vrot.lane.b32.xlu0 %v471, 80
        %v1436 = vpop.permute.xlu0 %1435
        %v1437 = vsel %vm480, %v1434, 0
        %v1439 = vsel %vm480, %v1436, 0
        %1441 = vmatpush.xpose.msra.mxu0 0.0
        %1442 = vmatpush.xpose.msra.mxu0 0.0
        %1443 = vmatpush.xpose.msra.mxu0 0.0
        %1444 = vmatpush.xpose.msra.mxu0 0.0
        %1445 = vmatpush.xpose.msra.mxu0 0.0
        %1446 = vmatpush.xpose.msra.mxu0 0.0
        %1447 = vmatpush.xpose.msra.mxu0 0.0
        %1448 = vmatpush.xpose.msra.mxu0 0.0
        %1449 = vmatpush.xpose.msra.mxu0 0.0
        %1450 = vmatpush.xpose.msra.mxu0 0.0
        %1451 = vmatpush.xpose.msra.mxu0 0.0
        %1452 = vmatpush.xpose.msra.mxu0 0.0
        %1453 = vmatpush.xpose.msra.mxu0 0.0
        %1454 = vmatpush.xpose.msra.mxu0 0.0
        %1455 = vmatpush.xpose.msra.mxu0 0.0
        %v1456 = vand.u32 %v1439, 4294901760
        %1457 = vmatpush.xpose.msra.mxu0 %v1456
        %v1458 = vand.u32 %v1437, 4294901760
        %v1459 = vsub.f32 %v1437, %v1458
        %v1460 = vand.u32 %v1459, 4294901760
        %v1461 = vsub.f32 %v1459, %v1460
        %v1462 = vand.u32 %v1461, 4294901760
        %1463 = vmatmul.f32.gmra.mxu0 %v1462
        %v1464 = vpop.f32.mrf.mxu0
        %v1465 = vadd.f32 0.0, %v1464
        %1466 = vdwg.mxu0
        %1467 = vmatpush.xpose.msra.mxu0 0.0
        %1468 = vmatpush.xpose.msra.mxu0 0.0
        %1469 = vmatpush.xpose.msra.mxu0 0.0
        %1470 = vmatpush.xpose.msra.mxu0 0.0
        %1471 = vmatpush.xpose.msra.mxu0 0.0
        %1472 = vmatpush.xpose.msra.mxu0 0.0
        %1473 = vmatpush.xpose.msra.mxu0 0.0
        %1474 = vmatpush.xpose.msra.mxu0 0.0
        %1475 = vmatpush.xpose.msra.mxu0 0.0
        %1476 = vmatpush.xpose.msra.mxu0 0.0
        %1477 = vmatpush.xpose.msra.mxu0 0.0
        %1478 = vmatpush.xpose.msra.mxu0 0.0
        %1479 = vmatpush.xpose.msra.mxu0 0.0
        %1480 = vmatpush.xpose.msra.mxu0 0.0
        %1481 = vmatpush.xpose.msra.mxu0 0.0
        %v1482 = vand.u32 %v1439, 4294901760
        %v1483 = vsub.f32 %v1439, %v1482
        %v1484 = vand.u32 %v1483, 4294901760
        %v1485 = vsub.f32 %v1483, %v1484
        %v1486 = vand.u32 %v1485, 4294901760
        %1487 = vmatpush.xpose.msra.mxu0 %v1486
        %v1488 = vand.u32 %v1437, 4294901760
        %1489 = vmatmul.f32.gmra.mxu0 %v1488
        %v1490 = vpop.f32.mrf.mxu0
        %v1491 = vadd.f32 %v1465, %v1490
        %1492 = vdwg.mxu0
        %1493 = vmatpush.xpose.msra.mxu0 0.0
        %1494 = vmatpush.xpose.msra.mxu0 0.0
        %1495 = vmatpush.xpose.msra.mxu0 0.0
        %1496 = vmatpush.xpose.msra.mxu0 0.0
        %1497 = vmatpush.xpose.msra.mxu0 0.0
        %1498 = vmatpush.xpose.msra.mxu0 0.0
        %1499 = vmatpush.xpose.msra.mxu0 0.0
        %1500 = vmatpush.xpose.msra.mxu0 0.0
        %1501 = vmatpush.xpose.msra.mxu0 0.0
        %1502 = vmatpush.xpose.msra.mxu0 0.0
        %1503 = vmatpush.xpose.msra.mxu0 0.0
        %1504 = vmatpush.xpose.msra.mxu0 0.0
        %1505 = vmatpush.xpose.msra.mxu0 0.0
        %1506 = vmatpush.xpose.msra.mxu0 0.0
        %1507 = vmatpush.xpose.msra.mxu0 0.0
        %v1508 = vand.u32 %v1439, 4294901760
        %v1509 = vsub.f32 %v1439, %v1508
        %1510 = vmatpush.xpose.msra.mxu0 %v1509
        %v1511 = vand.u32 %v1437, 4294901760
        %v1512 = vsub.f32 %v1437, %v1511
        %1513 = vmatmul.f32.gmra.mxu0 %v1512
        %v1514 = vpop.f32.mrf.mxu0
        %v1515 = vadd.f32 %v1491, %v1514
        %1516 = vdwg.mxu0
        %1517 = vmatpush.xpose.msra.mxu0 0.0
        %1518 = vmatpush.xpose.msra.mxu0 0.0
        %1519 = vmatpush.xpose.msra.mxu0 0.0
        %1520 = vmatpush.xpose.msra.mxu0 0.0
        %1521 = vmatpush.xpose.msra.mxu0 0.0
        %1522 = vmatpush.xpose.msra.mxu0 0.0
        %1523 = vmatpush.xpose.msra.mxu0 0.0
        %1524 = vmatpush.xpose.msra.mxu0 0.0
        %1525 = vmatpush.xpose.msra.mxu0 0.0
        %1526 = vmatpush.xpose.msra.mxu0 0.0
        %1527 = vmatpush.xpose.msra.mxu0 0.0
        %1528 = vmatpush.xpose.msra.mxu0 0.0
        %1529 = vmatpush.xpose.msra.mxu0 0.0
        %1530 = vmatpush.xpose.msra.mxu0 0.0
        %1531 = vmatpush.xpose.msra.mxu0 0.0
        %v1532 = vand.u32 %v1439, 4294901760
        %1533 = vmatpush.xpose.msra.mxu0 %v1532
        %v1534 = vand.u32 %v1437, 4294901760
        %v1535 = vsub.f32 %v1437, %v1534
        %v1536 = vand.u32 %v1535, 4294901760
        %1537 = vmatmul.f32.gmra.mxu0 %v1536
        %v1538 = vpop.f32.mrf.mxu0
        %v1539 = vadd.f32 %v1515, %v1538
        %1540 = vdwg.mxu0
        %1541 = vmatpush.xpose.msra.mxu0 0.0
        %1542 = vmatpush.xpose.msra.mxu0 0.0
        %1543 = vmatpush.xpose.msra.mxu0 0.0
        %1544 = vmatpush.xpose.msra.mxu0 0.0
        %1545 = vmatpush.xpose.msra.mxu0 0.0
        %1546 = vmatpush.xpose.msra.mxu0 0.0
        %1547 = vmatpush.xpose.msra.mxu0 0.0
        %1548 = vmatpush.xpose.msra.mxu0 0.0
        %1549 = vmatpush.xpose.msra.mxu0 0.0
        %1550 = vmatpush.xpose.msra.mxu0 0.0
        %1551 = vmatpush.xpose.msra.mxu0 0.0
        %1552 = vmatpush.xpose.msra.mxu0 0.0
        %1553 = vmatpush.xpose.msra.mxu0 0.0
        %1554 = vmatpush.xpose.msra.mxu0 0.0
        %1555 = vmatpush.xpose.msra.mxu0 0.0
        %v1556 = vand.u32 %v1439, 4294901760
        %v1557 = vsub.f32 %v1439, %v1556
        %v1558 = vand.u32 %v1557, 4294901760
        %1559 = vmatpush.xpose.msra.mxu0 %v1558
        %v1560 = vand.u32 %v1437, 4294901760
        %1561 = vmatmul.f32.gmra.mxu0 %v1560
        %v1562 = vpop.f32.mrf.mxu0
        %v1563 = vadd.f32 %v1539, %v1562
        %1564 = vdwg.mxu0
        %1565 = vmatpush.xpose.msra.mxu0 0.0
        %1566 = vmatpush.xpose.msra.mxu0 0.0
        %1567 = vmatpush.xpose.msra.mxu0 0.0
        %1568 = vmatpush.xpose.msra.mxu0 0.0
        %1569 = vmatpush.xpose.msra.mxu0 0.0
        %1570 = vmatpush.xpose.msra.mxu0 0.0
        %1571 = vmatpush.xpose.msra.mxu0 0.0
        %1572 = vmatpush.xpose.msra.mxu0 0.0
        %1573 = vmatpush.xpose.msra.mxu0 0.0
        %1574 = vmatpush.xpose.msra.mxu0 0.0
        %1575 = vmatpush.xpose.msra.mxu0 0.0
        %1576 = vmatpush.xpose.msra.mxu0 0.0
        %1577 = vmatpush.xpose.msra.mxu0 0.0
        %1578 = vmatpush.xpose.msra.mxu0 0.0
        %1579 = vmatpush.xpose.msra.mxu0 0.0
        %v1580 = vand.u32 %v1439, 4294901760
        %1581 = vmatpush.xpose.msra.mxu0 %v1580
        %v1582 = vand.u32 %v1437, 4294901760
        %1583 = vmatmul.f32.gmra.mxu0 %v1582
        %v1584 = vpop.f32.mrf.mxu0
        %v1585 = vadd.f32 %v1563, %v1584
        %1586 = vdwg.mxu0
        %v1587 = vmul.f32 %v1585, 0.35355338
        %v1588 = vsel %vm480, %v1587, -inf
        %1589 = vmax.xlane.f32.xlu0 %v1588
        %v1590 = vpop.xlane.xlu0 %1589
        %v1591 = vsub.f32 %v1587, %v1590
        %v1592 = vmul.f32 %v1591, 1.442695
        %v1593 = vpow.pop %v1592
        %v1594 = vsel %vm480, %v1593, 0.0
        %1595 = vadd.xlane.f32.xlu0 %v1594
        %v1596 = vpop.xlane.xlu0 %1595
        %v1597 = vrcp.pop %v1596
        %v1598 = vmul.f32 %v1596, %v1597
        %v1599 = vsub.f32 1.0, %v1598
        %v1600 = vmul.f32 %v1597, %v1599
        %v1601 = vadd.f32 %v1597, %v1600
        %vm1602 = vweird.f32 %v1596
        %vm1603 = vweird.f32 %v1597
        %vm1604 = vmor %vm1602, %vm1603
        %v1605 = vsel %vm1604, %v1597, %v1601
        %v1606 = vand.u32 2147483647, %v1596
        %vm1607 = vcmp.eq.f32.partialorder %v1606, 8.507059e+37
        %v1608 = vand.u32 %v1596, 2147483648
        %v1609 = vor.u32 1.1754944e-38, %v1608
        %v1610 = vsel %vm1607, %v1609, %v1605
        %v1611 = vmul.f32 %v1593, %v1610
        %1612 = vrot.lane.b32.xlu0 %v471, 48
        %v1613 = vpop.permute.xlu0 %1612
        %v1614 = vsel %vm480, %v1613, 0
        %1616 = vmatpush.msra.mxu0 0.0
        %1617 = vmatpush.msra.mxu0 0.0
        %1618 = vmatpush.msra.mxu0 0.0
        %1619 = vmatpush.msra.mxu0 0.0
        %1620 = vmatpush.msra.mxu0 0.0
        %1621 = vmatpush.msra.mxu0 0.0
        %1622 = vmatpush.msra.mxu0 0.0
        %1623 = vmatpush.msra.mxu0 0.0
        %1624 = vmatpush.msra.mxu0 0.0
        %1625 = vmatpush.msra.mxu0 0.0
        %1626 = vmatpush.msra.mxu0 0.0
        %1627 = vmatpush.msra.mxu0 0.0
        %1628 = vmatpush.msra.mxu0 0.0
        %1629 = vmatpush.msra.mxu0 0.0
        %1630 = vmatpush.msra.mxu0 0.0
        %v1631 = vand.u32 %v475, 4294901760
        %1632 = vmatpush.msra.mxu0 %v1631
        %v1633 = vand.u32 %v1614, 4294901760
        %v1634 = vsub.f32 %v1614, %v1633
        %v1635 = vand.u32 %v1634, 4294901760
        %v1636 = vsub.f32 %v1634, %v1635
        %v1637 = vand.u32 %v1636, 4294901760
        %1638 = vmatmul.f32.gmra.mxu0 %v1637
        %v1639 = vpop.f32.mrf.mxu0
        %v1640 = vadd.f32 0.0, %v1639
        %1641 = vdwg.mxu0
        %1642 = vmatpush.msra.mxu0 0.0
        %1643 = vmatpush.msra.mxu0 0.0
        %1644 = vmatpush.msra.mxu0 0.0
        %1645 = vmatpush.msra.mxu0 0.0
        %1646 = vmatpush.msra.mxu0 0.0
        %1647 = vmatpush.msra.mxu0 0.0
        %1648 = vmatpush.msra.mxu0 0.0
        %1649 = vmatpush.msra.mxu0 0.0
        %1650 = vmatpush.msra.mxu0 0.0
        %1651 = vmatpush.msra.mxu0 0.0
        %1652 = vmatpush.msra.mxu0 0.0
        %1653 = vmatpush.msra.mxu0 0.0
        %1654 = vmatpush.msra.mxu0 0.0
        %1655 = vmatpush.msra.mxu0 0.0
        %1656 = vmatpush.msra.mxu0 0.0
        %v1657 = vand.u32 %v475, 4294901760
        %v1658 = vsub.f32 %v475, %v1657
        %v1659 = vand.u32 %v1658, 4294901760
        %v1660 = vsub.f32 %v1658, %v1659
        %v1661 = vand.u32 %v1660, 4294901760
        %1662 = vmatpush.msra.mxu0 %v1661
        %v1663 = vand.u32 %v1614, 4294901760
        %1664 = vmatmul.f32.gmra.mxu0 %v1663
        %v1665 = vpop.f32.mrf.mxu0
        %v1666 = vadd.f32 %v1640, %v1665
        %1667 = vdwg.mxu0
        %1668 = vmatpush.msra.mxu0 0.0
        %1669 = vmatpush.msra.mxu0 0.0
        %1670 = vmatpush.msra.mxu0 0.0
        %1671 = vmatpush.msra.mxu0 0.0
        %1672 = vmatpush.msra.mxu0 0.0
        %1673 = vmatpush.msra.mxu0 0.0
        %1674 = vmatpush.msra.mxu0 0.0
        %1675 = vmatpush.msra.mxu0 0.0
        %1676 = vmatpush.msra.mxu0 0.0
        %1677 = vmatpush.msra.mxu0 0.0
        %1678 = vmatpush.msra.mxu0 0.0
        %1679 = vmatpush.msra.mxu0 0.0
        %1680 = vmatpush.msra.mxu0 0.0
        %1681 = vmatpush.msra.mxu0 0.0
        %1682 = vmatpush.msra.mxu0 0.0
        %v1683 = vand.u32 %v475, 4294901760
        %v1684 = vsub.f32 %v475, %v1683
        %1685 = vmatpush.msra.mxu0 %v1684
        %v1686 = vand.u32 %v1614, 4294901760
        %v1687 = vsub.f32 %v1614, %v1686
        %1688 = vmatmul.f32.gmra.mxu0 %v1687
        %v1689 = vpop.f32.mrf.mxu0
        %v1690 = vadd.f32 %v1666, %v1689
        %1691 = vdwg.mxu0
        %1692 = vmatpush.msra.mxu0 0.0
        %1693 = vmatpush.msra.mxu0 0.0
        %1694 = vmatpush.msra.mxu0 0.0
        %1695 = vmatpush.msra.mxu0 0.0
        %1696 = vmatpush.msra.mxu0 0.0
        %1697 = vmatpush.msra.mxu0 0.0
        %1698 = vmatpush.msra.mxu0 0.0
        %1699 = vmatpush.msra.mxu0 0.0
        %1700 = vmatpush.msra.mxu0 0.0
        %1701 = vmatpush.msra.mxu0 0.0
        %1702 = vmatpush.msra.mxu0 0.0
        %1703 = vmatpush.msra.mxu0 0.0
        %1704 = vmatpush.msra.mxu0 0.0
        %1705 = vmatpush.msra.mxu0 0.0
        %1706 = vmatpush.msra.mxu0 0.0
        %v1707 = vand.u32 %v475, 4294901760
        %1708 = vmatpush.msra.mxu0 %v1707
        %v1709 = vand.u32 %v1614, 4294901760
        %v1710 = vsub.f32 %v1614, %v1709
        %v1711 = vand.u32 %v1710, 4294901760
        %1712 = vmatmul.f32.gmra.mxu0 %v1711
        %v1713 = vpop.f32.mrf.mxu0
        %v1714 = vadd.f32 %v1690, %v1713
        %1715 = vdwg.mxu0
        %1716 = vmatpush.msra.mxu0 0.0
        %1717 = vmatpush.msra.mxu0 0.0
        %1718 = vmatpush.msra.mxu0 0.0
        %1719 = vmatpush.msra.mxu0 0.0
        %1720 = vmatpush.msra.mxu0 0.0
        %1721 = vmatpush.msra.mxu0 0.0
        %1722 = vmatpush.msra.mxu0 0.0
        %1723 = vmatpush.msra.mxu0 0.0
        %1724 = vmatpush.msra.mxu0 0.0
        %1725 = vmatpush.msra.mxu0 0.0
        %1726 = vmatpush.msra.mxu0 0.0
        %1727 = vmatpush.msra.mxu0 0.0
        %1728 = vmatpush.msra.mxu0 0.0
        %1729 = vmatpush.msra.mxu0 0.0
        %1730 = vmatpush.msra.mxu0 0.0
        %v1731 = vand.u32 %v475, 4294901760
        %v1732 = vsub.f32 %v475, %v1731
        %v1733 = vand.u32 %v1732, 4294901760
        %1734 = vmatpush.msra.mxu0 %v1733
        %v1735 = vand.u32 %v1614, 4294901760
        %1736 = vmatmul.f32.gmra.mxu0 %v1735
        %v1737 = vpop.f32.mrf.mxu0
        %v1738 = vadd.f32 %v1714, %v1737
        %1739 = vdwg.mxu0
        %1740 = vmatpush.msra.mxu0 0.0
        %1741 = vmatpush.msra.mxu0 0.0
        %1742 = vmatpush.msra.mxu0 0.0
        %1743 = vmatpush.msra.mxu0 0.0
        %1744 = vmatpush.msra.mxu0 0.0
        %1745 = vmatpush.msra.mxu0 0.0
        %1746 = vmatpush.msra.mxu0 0.0
        %1747 = vmatpush.msra.mxu0 0.0
        %1748 = vmatpush.msra.mxu0 0.0
        %1749 = vmatpush.msra.mxu0 0.0
        %1750 = vmatpush.msra.mxu0 0.0
        %1751 = vmatpush.msra.mxu0 0.0
        %1752 = vmatpush.msra.mxu0 0.0
        %1753 = vmatpush.msra.mxu0 0.0
        %1754 = vmatpush.msra.mxu0 0.0
        %v1755 = vand.u32 %v475, 4294901760
        %1756 = vmatpush.msra.mxu0 %v1755
        %v1757 = vand.u32 %v1614, 4294901760
        %1758 = vmatmul.f32.gmra.mxu0 %v1757
        %v1759 = vpop.f32.mrf.mxu0
        %v1760 = vadd.f32 %v1738, %v1759
        %1761 = vdwg.mxu0
        %v1763 = vsel %vm480, %v1611, 0
        %1765 = vmatpush.msra.mxu0 0.0
        %1766 = vmatpush.msra.mxu0 0.0
        %1767 = vmatpush.msra.mxu0 0.0
        %1768 = vmatpush.msra.mxu0 0.0
        %1769 = vmatpush.msra.mxu0 0.0
        %1770 = vmatpush.msra.mxu0 0.0
        %1771 = vmatpush.msra.mxu0 0.0
        %1772 = vmatpush.msra.mxu0 0.0
        %1773 = vmatpush.msra.mxu0 0.0
        %1774 = vmatpush.msra.mxu0 0.0
        %1775 = vmatpush.msra.mxu0 0.0
        %1776 = vmatpush.msra.mxu0 0.0
        %1777 = vmatpush.msra.mxu0 0.0
        %1778 = vmatpush.msra.mxu0 0.0
        %1779 = vmatpush.msra.mxu0 0.0
        %v1780 = vand.u32 %v1760, 4294901760
        %1781 = vmatpush.msra.mxu0 %v1780
        %v1782 = vand.u32 %v1763, 4294901760
        %v1783 = vsub.f32 %v1763, %v1782
        %v1784 = vand.u32 %v1783, 4294901760
        %v1785 = vsub.f32 %v1783, %v1784
        %v1786 = vand.u32 %v1785, 4294901760
        %1787 = vmatmul.f32.gmra.mxu0 %v1786
        %v1788 = vpop.f32.mrf.mxu0
        %v1789 = vadd.f32 0.0, %v1788
        %1790 = vdwg.mxu0
        %1791 = vmatpush.msra.mxu0 0.0
        %1792 = vmatpush.msra.mxu0 0.0
        %1793 = vmatpush.msra.mxu0 0.0
        %1794 = vmatpush.msra.mxu0 0.0
        %1795 = vmatpush.msra.mxu0 0.0
        %1796 = vmatpush.msra.mxu0 0.0
        %1797 = vmatpush.msra.mxu0 0.0
        %1798 = vmatpush.msra.mxu0 0.0
        %1799 = vmatpush.msra.mxu0 0.0
        %1800 = vmatpush.msra.mxu0 0.0
        %1801 = vmatpush.msra.mxu0 0.0
        %1802 = vmatpush.msra.mxu0 0.0
        %1803 = vmatpush.msra.mxu0 0.0
        %1804 = vmatpush.msra.mxu0 0.0
        %1805 = vmatpush.msra.mxu0 0.0
        %v1806 = vand.u32 %v1760, 4294901760
        %v1807 = vsub.f32 %v1760, %v1806
        %v1808 = vand.u32 %v1807, 4294901760
        %v1809 = vsub.f32 %v1807, %v1808
        %v1810 = vand.u32 %v1809, 4294901760
        %1811 = vmatpush.msra.mxu0 %v1810
        %v1812 = vand.u32 %v1763, 4294901760
        %1813 = vmatmul.f32.gmra.mxu0 %v1812
        %v1814 = vpop.f32.mrf.mxu0
        %v1815 = vadd.f32 %v1789, %v1814
        %1816 = vdwg.mxu0
        %1817 = vmatpush.msra.mxu0 0.0
        %1818 = vmatpush.msra.mxu0 0.0
        %1819 = vmatpush.msra.mxu0 0.0
        %1820 = vmatpush.msra.mxu0 0.0
        %1821 = vmatpush.msra.mxu0 0.0
        %1822 = vmatpush.msra.mxu0 0.0
        %1823 = vmatpush.msra.mxu0 0.0
        %1824 = vmatpush.msra.mxu0 0.0
        %1825 = vmatpush.msra.mxu0 0.0
        %1826 = vmatpush.msra.mxu0 0.0
        %1827 = vmatpush.msra.mxu0 0.0
        %1828 = vmatpush.msra.mxu0 0.0
        %1829 = vmatpush.msra.mxu0 0.0
        %1830 = vmatpush.msra.mxu0 0.0
        %1831 = vmatpush.msra.mxu0 0.0
        %v1832 = vand.u32 %v1760, 4294901760
        %v1833 = vsub.f32 %v1760, %v1832
        %1834 = vmatpush.msra.mxu0 %v1833
        %v1835 = vand.u32 %v1763, 4294901760
        %v1836 = vsub.f32 %v1763, %v1835
        %1837 = vmatmul.f32.gmra.mxu0 %v1836
        %v1838 = vpop.f32.mrf.mxu0
        %v1839 = vadd.f32 %v1815, %v1838
        %1840 = vdwg.mxu0
        %1841 = vmatpush.msra.mxu0 0.0
        %1842 = vmatpush.msra.mxu0 0.0
        %1843 = vmatpush.msra.mxu0 0.0
        %1844 = vmatpush.msra.mxu0 0.0
        %1845 = vmatpush.msra.mxu0 0.0
        %1846 = vmatpush.msra.mxu0 0.0
        %1847 = vmatpush.msra.mxu0 0.0
        %1848 = vmatpush.msra.mxu0 0.0
        %1849 = vmatpush.msra.mxu0 0.0
        %1850 = vmatpush.msra.mxu0 0.0
        %1851 = vmatpush.msra.mxu0 0.0
        %1852 = vmatpush.msra.mxu0 0.0
        %1853 = vmatpush.msra.mxu0 0.0
        %1854 = vmatpush.msra.mxu0 0.0
        %1855 = vmatpush.msra.mxu0 0.0
        %v1856 = vand.u32 %v1760, 4294901760
        %1857 = vmatpush.msra.mxu0 %v1856
        %v1858 = vand.u32 %v1763, 4294901760
        %v1859 = vsub.f32 %v1763, %v1858
        %v1860 = vand.u32 %v1859, 4294901760
        %1861 = vmatmul.f32.gmra.mxu0 %v1860
        %v1862 = vpop.f32.mrf.mxu0
        %v1863 = vadd.f32 %v1839, %v1862
        %1864 = vdwg.mxu0
        %1865 = vmatpush.msra.mxu0 0.0
        %1866 = vmatpush.msra.mxu0 0.0
        %1867 = vmatpush.msra.mxu0 0.0
        %1868 = vmatpush.msra.mxu0 0.0
        %1869 = vmatpush.msra.mxu0 0.0
        %1870 = vmatpush.msra.mxu0 0.0
        %1871 = vmatpush.msra.mxu0 0.0
        %1872 = vmatpush.msra.mxu0 0.0
        %1873 = vmatpush.msra.mxu0 0.0
        %1874 = vmatpush.msra.mxu0 0.0
        %1875 = vmatpush.msra.mxu0 0.0
        %1876 = vmatpush.msra.mxu0 0.0
        %1877 = vmatpush.msra.mxu0 0.0
        %1878 = vmatpush.msra.mxu0 0.0
        %1879 = vmatpush.msra.mxu0 0.0
        %v1880 = vand.u32 %v1760, 4294901760
        %v1881 = vsub.f32 %v1760, %v1880
        %v1882 = vand.u32 %v1881, 4294901760
        %1883 = vmatpush.msra.mxu0 %v1882
        %v1884 = vand.u32 %v1763, 4294901760
        %1885 = vmatmul.f32.gmra.mxu0 %v1884
        %v1886 = vpop.f32.mrf.mxu0
        %v1887 = vadd.f32 %v1863, %v1886
        %1888 = vdwg.mxu0
        %1889 = vmatpush.msra.mxu0 0.0
        %1890 = vmatpush.msra.mxu0 0.0
        %1891 = vmatpush.msra.mxu0 0.0
        %1892 = vmatpush.msra.mxu0 0.0
        %1893 = vmatpush.msra.mxu0 0.0
        %1894 = vmatpush.msra.mxu0 0.0
        %1895 = vmatpush.msra.mxu0 0.0
        %1896 = vmatpush.msra.mxu0 0.0
        %1897 = vmatpush.msra.mxu0 0.0
        %1898 = vmatpush.msra.mxu0 0.0
        %1899 = vmatpush.msra.mxu0 0.0
        %1900 = vmatpush.msra.mxu0 0.0
        %1901 = vmatpush.msra.mxu0 0.0
        %1902 = vmatpush.msra.mxu0 0.0
        %1903 = vmatpush.msra.mxu0 0.0
        %v1904 = vand.u32 %v1760, 4294901760
        %1905 = vmatpush.msra.mxu0 %v1904
        %v1906 = vand.u32 %v1763, 4294901760
        %1907 = vmatmul.f32.gmra.mxu0 %v1906
        %v1908 = vpop.f32.mrf.mxu0
        %v1909 = vadd.f32 %v1887, %v1908
        %1910 = vdwg.mxu0
        %v1911 = vadd.f32 %v1431, %v1909
        %1912 = vrot.lane.b32.xlu0 %v471, 104
        %v1913 = vpop.permute.xlu0 %1912
        %1914 = vrot.lane.b32.xlu0 %v471, 72
        %v1915 = vpop.permute.xlu0 %1914
        %v1916 = vsel %vm480, %v1913, 0
        %v1918 = vsel %vm480, %v1915, 0
        %1920 = vmatpush.xpose.msra.mxu0 0.0
        %1921 = vmatpush.xpose.msra.mxu0 0.0
        %1922 = vmatpush.xpose.msra.mxu0 0.0
        %1923 = vmatpush.xpose.msra.mxu0 0.0
        %1924 = vmatpush.xpose.msra.mxu0 0.0
        %1925 = vmatpush.xpose.msra.mxu0 0.0
        %1926 = vmatpush.xpose.msra.mxu0 0.0
        %1927 = vmatpush.xpose.msra.mxu0 0.0
        %1928 = vmatpush.xpose.msra.mxu0 0.0
        %1929 = vmatpush.xpose.msra.mxu0 0.0
        %1930 = vmatpush.xpose.msra.mxu0 0.0
        %1931 = vmatpush.xpose.msra.mxu0 0.0
        %1932 = vmatpush.xpose.msra.mxu0 0.0
        %1933 = vmatpush.xpose.msra.mxu0 0.0
        %1934 = vmatpush.xpose.msra.mxu0 0.0
        %v1935 = vand.u32 %v1918, 4294901760
        %1936 = vmatpush.xpose.msra.mxu0 %v1935
        %v1937 = vand.u32 %v1916, 4294901760
        %v1938 = vsub.f32 %v1916, %v1937
        %v1939 = vand.u32 %v1938, 4294901760
        %v1940 = vsub.f32 %v1938, %v1939
        %v1941 = vand.u32 %v1940, 4294901760
        %1942 = vmatmul.f32.gmra.mxu0 %v1941
        %v1943 = vpop.f32.mrf.mxu0
        %v1944 = vadd.f32 0.0, %v1943
        %1945 = vdwg.mxu0
        %1946 = vmatpush.xpose.msra.mxu0 0.0
        %1947 = vmatpush.xpose.msra.mxu0 0.0
        %1948 = vmatpush.xpose.msra.mxu0 0.0
        %1949 = vmatpush.xpose.msra.mxu0 0.0
        %1950 = vmatpush.xpose.msra.mxu0 0.0
        %1951 = vmatpush.xpose.msra.mxu0 0.0
        %1952 = vmatpush.xpose.msra.mxu0 0.0
        %1953 = vmatpush.xpose.msra.mxu0 0.0
        %1954 = vmatpush.xpose.msra.mxu0 0.0
        %1955 = vmatpush.xpose.msra.mxu0 0.0
        %1956 = vmatpush.xpose.msra.mxu0 0.0
        %1957 = vmatpush.xpose.msra.mxu0 0.0
        %1958 = vmatpush.xpose.msra.mxu0 0.0
        %1959 = vmatpush.xpose.msra.mxu0 0.0
        %1960 = vmatpush.xpose.msra.mxu0 0.0
        %v1961 = vand.u32 %v1918, 4294901760
        %v1962 = vsub.f32 %v1918, %v1961
        %v1963 = vand.u32 %v1962, 4294901760
        %v1964 = vsub.f32 %v1962, %v1963
        %v1965 = vand.u32 %v1964, 4294901760
        %1966 = vmatpush.xpose.msra.mxu0 %v1965
        %v1967 = vand.u32 %v1916, 4294901760
        %1968 = vmatmul.f32.gmra.mxu0 %v1967
        %v1969 = vpop.f32.mrf.mxu0
        %v1970 = vadd.f32 %v1944, %v1969
        %1971 = vdwg.mxu0
        %1972 = vmatpush.xpose.msra.mxu0 0.0
        %1973 = vmatpush.xpose.msra.mxu0 0.0
        %1974 = vmatpush.xpose.msra.mxu0 0.0
        %1975 = vmatpush.xpose.msra.mxu0 0.0
        %1976 = vmatpush.xpose.msra.mxu0 0.0
        %1977 = vmatpush.xpose.msra.mxu0 0.0
        %1978 = vmatpush.xpose.msra.mxu0 0.0
        %1979 = vmatpush.xpose.msra.mxu0 0.0
        %1980 = vmatpush.xpose.msra.mxu0 0.0
        %1981 = vmatpush.xpose.msra.mxu0 0.0
        %1982 = vmatpush.xpose.msra.mxu0 0.0
        %1983 = vmatpush.xpose.msra.mxu0 0.0
        %1984 = vmatpush.xpose.msra.mxu0 0.0
        %1985 = vmatpush.xpose.msra.mxu0 0.0
        %1986 = vmatpush.xpose.msra.mxu0 0.0
        %v1987 = vand.u32 %v1918, 4294901760
        %v1988 = vsub.f32 %v1918, %v1987
        %1989 = vmatpush.xpose.msra.mxu0 %v1988
        %v1990 = vand.u32 %v1916, 4294901760
        %v1991 = vsub.f32 %v1916, %v1990
        %1992 = vmatmul.f32.gmra.mxu0 %v1991
        %v1993 = vpop.f32.mrf.mxu0
        %v1994 = vadd.f32 %v1970, %v1993
        %1995 = vdwg.mxu0
        %1996 = vmatpush.xpose.msra.mxu0 0.0
        %1997 = vmatpush.xpose.msra.mxu0 0.0
        %1998 = vmatpush.xpose.msra.mxu0 0.0
        %1999 = vmatpush.xpose.msra.mxu0 0.0
        %2000 = vmatpush.xpose.msra.mxu0 0.0
        %2001 = vmatpush.xpose.msra.mxu0 0.0
        %2002 = vmatpush.xpose.msra.mxu0 0.0
        %2003 = vmatpush.xpose.msra.mxu0 0.0
        %2004 = vmatpush.xpose.msra.mxu0 0.0
        %2005 = vmatpush.xpose.msra.mxu0 0.0
        %2006 = vmatpush.xpose.msra.mxu0 0.0
        %2007 = vmatpush.xpose.msra.mxu0 0.0
        %2008 = vmatpush.xpose.msra.mxu0 0.0
        %2009 = vmatpush.xpose.msra.mxu0 0.0
        %2010 = vmatpush.xpose.msra.mxu0 0.0
        %v2011 = vand.u32 %v1918, 4294901760
        %2012 = vmatpush.xpose.msra.mxu0 %v2011
        %v2013 = vand.u32 %v1916, 4294901760
        %v2014 = vsub.f32 %v1916, %v2013
        %v2015 = vand.u32 %v2014, 4294901760
        %2016 = vmatmul.f32.gmra.mxu0 %v2015
        %v2017 = vpop.f32.mrf.mxu0
        %v2018 = vadd.f32 %v1994, %v2017
        %2019 = vdwg.mxu0
        %2020 = vmatpush.xpose.msra.mxu0 0.0
        %2021 = vmatpush.xpose.msra.mxu0 0.0
        %2022 = vmatpush.xpose.msra.mxu0 0.0
        %2023 = vmatpush.xpose.msra.mxu0 0.0
        %2024 = vmatpush.xpose.msra.mxu0 0.0
        %2025 = vmatpush.xpose.msra.mxu0 0.0
        %2026 = vmatpush.xpose.msra.mxu0 0.0
        %2027 = vmatpush.xpose.msra.mxu0 0.0
        %2028 = vmatpush.xpose.msra.mxu0 0.0
        %2029 = vmatpush.xpose.msra.mxu0 0.0
        %2030 = vmatpush.xpose.msra.mxu0 0.0
        %2031 = vmatpush.xpose.msra.mxu0 0.0
        %2032 = vmatpush.xpose.msra.mxu0 0.0
        %2033 = vmatpush.xpose.msra.mxu0 0.0
        %2034 = vmatpush.xpose.msra.mxu0 0.0
        %v2035 = vand.u32 %v1918, 4294901760
        %v2036 = vsub.f32 %v1918, %v2035
        %v2037 = vand.u32 %v2036, 4294901760
        %2038 = vmatpush.xpose.msra.mxu0 %v2037
        %v2039 = vand.u32 %v1916, 4294901760
        %2040 = vmatmul.f32.gmra.mxu0 %v2039
        %v2041 = vpop.f32.mrf.mxu0
        %v2042 = vadd.f32 %v2018, %v2041
        %2043 = vdwg.mxu0
        %2044 = vmatpush.xpose.msra.mxu0 0.0
        %2045 = vmatpush.xpose.msra.mxu0 0.0
        %2046 = vmatpush.xpose.msra.mxu0 0.0
        %2047 = vmatpush.xpose.msra.mxu0 0.0
        %2048 = vmatpush.xpose.msra.mxu0 0.0
        %2049 = vmatpush.xpose.msra.mxu0 0.0
        %2050 = vmatpush.xpose.msra.mxu0 0.0
        %2051 = vmatpush.xpose.msra.mxu0 0.0
        %2052 = vmatpush.xpose.msra.mxu0 0.0
        %2053 = vmatpush.xpose.msra.mxu0 0.0
        %2054 = vmatpush.xpose.msra.mxu0 0.0
        %2055 = vmatpush.xpose.msra.mxu0 0.0
        %2056 = vmatpush.xpose.msra.mxu0 0.0
        %2057 = vmatpush.xpose.msra.mxu0 0.0
        %2058 = vmatpush.xpose.msra.mxu0 0.0
        %v2059 = vand.u32 %v1918, 4294901760
        %2060 = vmatpush.xpose.msra.mxu0 %v2059
        %v2061 = vand.u32 %v1916, 4294901760
        %2062 = vmatmul.f32.gmra.mxu0 %v2061
        %v2063 = vpop.f32.mrf.mxu0
        %v2064 = vadd.f32 %v2042, %v2063
        %2065 = vdwg.mxu0
        %v2066 = vmul.f32 %v2064, 0.35355338
        %v2067 = vsel %vm480, %v2066, -inf
        %2068 = vmax.xlane.f32.xlu0 %v2067
        %v2069 = vpop.xlane.xlu0 %2068
        %v2070 = vsub.f32 %v2066, %v2069
        %v2071 = vmul.f32 %v2070, 1.442695
        %v2072 = vpow.pop %v2071
        %v2073 = vsel %vm480, %v2072, 0.0
        %2074 = vadd.xlane.f32.xlu0 %v2073
        %v2075 = vpop.xlane.xlu0 %2074
        %v2076 = vrcp.pop %v2075
        %v2077 = vmul.f32 %v2075, %v2076
        %v2078 = vsub.f32 1.0, %v2077
        %v2079 = vmul.f32 %v2076, %v2078
        %v2080 = vadd.f32 %v2076, %v2079
        %vm2081 = vweird.f32 %v2075
        %vm2082 = vweird.f32 %v2076
        %vm2083 = vmor %vm2081, %vm2082
        %v2084 = vsel %vm2083, %v2076, %v2080
        %v2085 = vand.u32 2147483647, %v2075
        %vm2086 = vcmp.eq.f32.partialorder %v2085, 8.507059e+37
        %v2087 = vand.u32 %v2075, 2147483648
        %v2088 = vor.u32 1.1754944e-38, %v2087
        %v2089 = vsel %vm2086, %v2088, %v2084
        %v2090 = vmul.f32 %v2072, %v2089
        %2091 = vrot.lane.b32.xlu0 %v471, 40
        %v2092 = vpop.permute.xlu0 %2091
        %v2093 = vsel %vm480, %v2092, 0
        %2095 = vmatpush.msra.mxu0 0.0
        %2096 = vmatpush.msra.mxu0 0.0
        %2097 = vmatpush.msra.mxu0 0.0
        %2098 = vmatpush.msra.mxu0 0.0
        %2099 = vmatpush.msra.mxu0 0.0
        %2100 = vmatpush.msra.mxu0 0.0
        %2101 = vmatpush.msra.mxu0 0.0
        %2102 = vmatpush.msra.mxu0 0.0
        %2103 = vmatpush.msra.mxu0 0.0
        %2104 = vmatpush.msra.mxu0 0.0
        %2105 = vmatpush.msra.mxu0 0.0
        %2106 = vmatpush.msra.mxu0 0.0
        %2107 = vmatpush.msra.mxu0 0.0
        %2108 = vmatpush.msra.mxu0 0.0
        %2109 = vmatpush.msra.mxu0 0.0
        %v2110 = vand.u32 %v476, 4294901760
        %2111 = vmatpush.msra.mxu0 %v2110
        %v2112 = vand.u32 %v2093, 4294901760
        %v2113 = vsub.f32 %v2093, %v2112
        %v2114 = vand.u32 %v2113, 4294901760
        %v2115 = vsub.f32 %v2113, %v2114
        %v2116 = vand.u32 %v2115, 4294901760
        %2117 = vmatmul.f32.gmra.mxu0 %v2116
        %v2118 = vpop.f32.mrf.mxu0
        %v2119 = vadd.f32 0.0, %v2118
        %2120 = vdwg.mxu0
        %2121 = vmatpush.msra.mxu0 0.0
        %2122 = vmatpush.msra.mxu0 0.0
        %2123 = vmatpush.msra.mxu0 0.0
        %2124 = vmatpush.msra.mxu0 0.0
        %2125 = vmatpush.msra.mxu0 0.0
        %2126 = vmatpush.msra.mxu0 0.0
        %2127 = vmatpush.msra.mxu0 0.0
        %2128 = vmatpush.msra.mxu0 0.0
        %2129 = vmatpush.msra.mxu0 0.0
        %2130 = vmatpush.msra.mxu0 0.0
        %2131 = vmatpush.msra.mxu0 0.0
        %2132 = vmatpush.msra.mxu0 0.0
        %2133 = vmatpush.msra.mxu0 0.0
        %2134 = vmatpush.msra.mxu0 0.0
        %2135 = vmatpush.msra.mxu0 0.0
        %v2136 = vand.u32 %v476, 4294901760
        %v2137 = vsub.f32 %v476, %v2136
        %v2138 = vand.u32 %v2137, 4294901760
        %v2139 = vsub.f32 %v2137, %v2138
        %v2140 = vand.u32 %v2139, 4294901760
        %2141 = vmatpush.msra.mxu0 %v2140
        %v2142 = vand.u32 %v2093, 4294901760
        %2143 = vmatmul.f32.gmra.mxu0 %v2142
        %v2144 = vpop.f32.mrf.mxu0
        %v2145 = vadd.f32 %v2119, %v2144
        %2146 = vdwg.mxu0
        %2147 = vmatpush.msra.mxu0 0.0
        %2148 = vmatpush.msra.mxu0 0.0
        %2149 = vmatpush.msra.mxu0 0.0
        %2150 = vmatpush.msra.mxu0 0.0
        %2151 = vmatpush.msra.mxu0 0.0
        %2152 = vmatpush.msra.mxu0 0.0
        %2153 = vmatpush.msra.mxu0 0.0
        %2154 = vmatpush.msra.mxu0 0.0
        %2155 = vmatpush.msra.mxu0 0.0
        %2156 = vmatpush.msra.mxu0 0.0
        %2157 = vmatpush.msra.mxu0 0.0
        %2158 = vmatpush.msra.mxu0 0.0
        %2159 = vmatpush.msra.mxu0 0.0
        %2160 = vmatpush.msra.mxu0 0.0
        %2161 = vmatpush.msra.mxu0 0.0
        %v2162 = vand.u32 %v476, 4294901760
        %v2163 = vsub.f32 %v476, %v2162
        %2164 = vmatpush.msra.mxu0 %v2163
        %v2165 = vand.u32 %v2093, 4294901760
        %v2166 = vsub.f32 %v2093, %v2165
        %2167 = vmatmul.f32.gmra.mxu0 %v2166
        %v2168 = vpop.f32.mrf.mxu0
        %v2169 = vadd.f32 %v2145, %v2168
        %2170 = vdwg.mxu0
        %2171 = vmatpush.msra.mxu0 0.0
        %2172 = vmatpush.msra.mxu0 0.0
        %2173 = vmatpush.msra.mxu0 0.0
        %2174 = vmatpush.msra.mxu0 0.0
        %2175 = vmatpush.msra.mxu0 0.0
        %2176 = vmatpush.msra.mxu0 0.0
        %2177 = vmatpush.msra.mxu0 0.0
        %2178 = vmatpush.msra.mxu0 0.0
        %2179 = vmatpush.msra.mxu0 0.0
        %2180 = vmatpush.msra.mxu0 0.0
        %2181 = vmatpush.msra.mxu0 0.0
        %2182 = vmatpush.msra.mxu0 0.0
        %2183 = vmatpush.msra.mxu0 0.0
        %2184 = vmatpush.msra.mxu0 0.0
        %2185 = vmatpush.msra.mxu0 0.0
        %v2186 = vand.u32 %v476, 4294901760
        %2187 = vmatpush.msra.mxu0 %v2186
        %v2188 = vand.u32 %v2093, 4294901760
        %v2189 = vsub.f32 %v2093, %v2188
        %v2190 = vand.u32 %v2189, 4294901760
        %2191 = vmatmul.f32.gmra.mxu0 %v2190
        %v2192 = vpop.f32.mrf.mxu0
        %v2193 = vadd.f32 %v2169, %v2192
        %2194 = vdwg.mxu0
        %2195 = vmatpush.msra.mxu0 0.0
        %2196 = vmatpush.msra.mxu0 0.0
        %2197 = vmatpush.msra.mxu0 0.0
        %2198 = vmatpush.msra.mxu0 0.0
        %2199 = vmatpush.msra.mxu0 0.0
        %2200 = vmatpush.msra.mxu0 0.0
        %2201 = vmatpush.msra.mxu0 0.0
        %2202 = vmatpush.msra.mxu0 0.0
        %2203 = vmatpush.msra.mxu0 0.0
        %2204 = vmatpush.msra.mxu0 0.0
        %2205 = vmatpush.msra.mxu0 0.0
        %2206 = vmatpush.msra.mxu0 0.0
        %2207 = vmatpush.msra.mxu0 0.0
        %2208 = vmatpush.msra.mxu0 0.0
        %2209 = vmatpush.msra.mxu0 0.0
        %v2210 = vand.u32 %v476, 4294901760
        %v2211 = vsub.f32 %v476, %v2210
        %v2212 = vand.u32 %v2211, 4294901760
        %2213 = vmatpush.msra.mxu0 %v2212
        %v2214 = vand.u32 %v2093, 4294901760
        %2215 = vmatmul.f32.gmra.mxu0 %v2214
        %v2216 = vpop.f32.mrf.mxu0
        %v2217 = vadd.f32 %v2193, %v2216
        %2218 = vdwg.mxu0
        %2219 = vmatpush.msra.mxu0 0.0
        %2220 = vmatpush.msra.mxu0 0.0
        %2221 = vmatpush.msra.mxu0 0.0
        %2222 = vmatpush.msra.mxu0 0.0
        %2223 = vmatpush.msra.mxu0 0.0
        %2224 = vmatpush.msra.mxu0 0.0
        %2225 = vmatpush.msra.mxu0 0.0
        %2226 = vmatpush.msra.mxu0 0.0
        %2227 = vmatpush.msra.mxu0 0.0
        %2228 = vmatpush.msra.mxu0 0.0
        %2229 = vmatpush.msra.mxu0 0.0
        %2230 = vmatpush.msra.mxu0 0.0
        %2231 = vmatpush.msra.mxu0 0.0
        %2232 = vmatpush.msra.mxu0 0.0
        %2233 = vmatpush.msra.mxu0 0.0
        %v2234 = vand.u32 %v476, 4294901760
        %2235 = vmatpush.msra.mxu0 %v2234
        %v2236 = vand.u32 %v2093, 4294901760
        %2237 = vmatmul.f32.gmra.mxu0 %v2236
        %v2238 = vpop.f32.mrf.mxu0
        %v2239 = vadd.f32 %v2217, %v2238
        %2240 = vdwg.mxu0
        %v2242 = vsel %vm480, %v2090, 0
        %2244 = vmatpush.msra.mxu0 0.0
        %2245 = vmatpush.msra.mxu0 0.0
        %2246 = vmatpush.msra.mxu0 0.0
        %2247 = vmatpush.msra.mxu0 0.0
        %2248 = vmatpush.msra.mxu0 0.0
        %2249 = vmatpush.msra.mxu0 0.0
        %2250 = vmatpush.msra.mxu0 0.0
        %2251 = vmatpush.msra.mxu0 0.0
        %2252 = vmatpush.msra.mxu0 0.0
        %2253 = vmatpush.msra.mxu0 0.0
        %2254 = vmatpush.msra.mxu0 0.0
        %2255 = vmatpush.msra.mxu0 0.0
        %2256 = vmatpush.msra.mxu0 0.0
        %2257 = vmatpush.msra.mxu0 0.0
        %2258 = vmatpush.msra.mxu0 0.0
        %v2259 = vand.u32 %v2239, 4294901760
        %2260 = vmatpush.msra.mxu0 %v2259
        %v2261 = vand.u32 %v2242, 4294901760
        %v2262 = vsub.f32 %v2242, %v2261
        %v2263 = vand.u32 %v2262, 4294901760
        %v2264 = vsub.f32 %v2262, %v2263
        %v2265 = vand.u32 %v2264, 4294901760
        %2266 = vmatmul.f32.gmra.mxu0 %v2265
        %v2267 = vpop.f32.mrf.mxu0
        %v2268 = vadd.f32 0.0, %v2267
        %2269 = vdwg.mxu0
        %2270 = vmatpush.msra.mxu0 0.0
        %2271 = vmatpush.msra.mxu0 0.0
        %2272 = vmatpush.msra.mxu0 0.0
        %2273 = vmatpush.msra.mxu0 0.0
        %2274 = vmatpush.msra.mxu0 0.0
        %2275 = vmatpush.msra.mxu0 0.0
        %2276 = vmatpush.msra.mxu0 0.0
        %2277 = vmatpush.msra.mxu0 0.0
        %2278 = vmatpush.msra.mxu0 0.0
        %2279 = vmatpush.msra.mxu0 0.0
        %2280 = vmatpush.msra.mxu0 0.0
        %2281 = vmatpush.msra.mxu0 0.0
        %2282 = vmatpush.msra.mxu0 0.0
        %2283 = vmatpush.msra.mxu0 0.0
        %2284 = vmatpush.msra.mxu0 0.0
        %v2285 = vand.u32 %v2239, 4294901760
        %v2286 = vsub.f32 %v2239, %v2285
        %v2287 = vand.u32 %v2286, 4294901760
        %v2288 = vsub.f32 %v2286, %v2287
        %v2289 = vand.u32 %v2288, 4294901760
        %2290 = vmatpush.msra.mxu0 %v2289
        %v2291 = vand.u32 %v2242, 4294901760
        %2292 = vmatmul.f32.gmra.mxu0 %v2291
        %v2293 = vpop.f32.mrf.mxu0
        %v2294 = vadd.f32 %v2268, %v2293
        %2295 = vdwg.mxu0
        %2296 = vmatpush.msra.mxu0 0.0
        %2297 = vmatpush.msra.mxu0 0.0
        %2298 = vmatpush.msra.mxu0 0.0
        %2299 = vmatpush.msra.mxu0 0.0
        %2300 = vmatpush.msra.mxu0 0.0
        %2301 = vmatpush.msra.mxu0 0.0
        %2302 = vmatpush.msra.mxu0 0.0
        %2303 = vmatpush.msra.mxu0 0.0
        %2304 = vmatpush.msra.mxu0 0.0
        %2305 = vmatpush.msra.mxu0 0.0
        %2306 = vmatpush.msra.mxu0 0.0
        %2307 = vmatpush.msra.mxu0 0.0
        %2308 = vmatpush.msra.mxu0 0.0
        %2309 = vmatpush.msra.mxu0 0.0
        %2310 = vmatpush.msra.mxu0 0.0
        %v2311 = vand.u32 %v2239, 4294901760
        %v2312 = vsub.f32 %v2239, %v2311
        %2313 = vmatpush.msra.mxu0 %v2312
        %v2314 = vand.u32 %v2242, 4294901760
        %v2315 = vsub.f32 %v2242, %v2314
        %2316 = vmatmul.f32.gmra.mxu0 %v2315
        %v2317 = vpop.f32.mrf.mxu0
        %v2318 = vadd.f32 %v2294, %v2317
        %2319 = vdwg.mxu0
        %2320 = vmatpush.msra.mxu0 0.0
        %2321 = vmatpush.msra.mxu0 0.0
        %2322 = vmatpush.msra.mxu0 0.0
        %2323 = vmatpush.msra.mxu0 0.0
        %2324 = vmatpush.msra.mxu0 0.0
        %2325 = vmatpush.msra.mxu0 0.0
        %2326 = vmatpush.msra.mxu0 0.0
        %2327 = vmatpush.msra.mxu0 0.0
        %2328 = vmatpush.msra.mxu0 0.0
        %2329 = vmatpush.msra.mxu0 0.0
        %2330 = vmatpush.msra.mxu0 0.0
        %2331 = vmatpush.msra.mxu0 0.0
        %2332 = vmatpush.msra.mxu0 0.0
        %2333 = vmatpush.msra.mxu0 0.0
        %2334 = vmatpush.msra.mxu0 0.0
        %v2335 = vand.u32 %v2239, 4294901760
        %2336 = vmatpush.msra.mxu0 %v2335
        %v2337 = vand.u32 %v2242, 4294901760
        %v2338 = vsub.f32 %v2242, %v2337
        %v2339 = vand.u32 %v2338, 4294901760
        %2340 = vmatmul.f32.gmra.mxu0 %v2339
        %v2341 = vpop.f32.mrf.mxu0
        %v2342 = vadd.f32 %v2318, %v2341
        %2343 = vdwg.mxu0
        %2344 = vmatpush.msra.mxu0 0.0
        %2345 = vmatpush.msra.mxu0 0.0
        %2346 = vmatpush.msra.mxu0 0.0
        %2347 = vmatpush.msra.mxu0 0.0
        %2348 = vmatpush.msra.mxu0 0.0
        %2349 = vmatpush.msra.mxu0 0.0
        %2350 = vmatpush.msra.mxu0 0.0
        %2351 = vmatpush.msra.mxu0 0.0
        %2352 = vmatpush.msra.mxu0 0.0
        %2353 = vmatpush.msra.mxu0 0.0
        %2354 = vmatpush.msra.mxu0 0.0
        %2355 = vmatpush.msra.mxu0 0.0
        %2356 = vmatpush.msra.mxu0 0.0
        %2357 = vmatpush.msra.mxu0 0.0
        %2358 = vmatpush.msra.mxu0 0.0
        %v2359 = vand.u32 %v2239, 4294901760
        %v2360 = vsub.f32 %v2239, %v2359
        %v2361 = vand.u32 %v2360, 4294901760
        %2362 = vmatpush.msra.mxu0 %v2361
        %v2363 = vand.u32 %v2242, 4294901760
        %2364 = vmatmul.f32.gmra.mxu0 %v2363
        %v2365 = vpop.f32.mrf.mxu0
        %v2366 = vadd.f32 %v2342, %v2365
        %2367 = vdwg.mxu0
        %2368 = vmatpush.msra.mxu0 0.0
        %2369 = vmatpush.msra.mxu0 0.0
        %2370 = vmatpush.msra.mxu0 0.0
        %2371 = vmatpush.msra.mxu0 0.0
        %2372 = vmatpush.msra.mxu0 0.0
        %2373 = vmatpush.msra.mxu0 0.0
        %2374 = vmatpush.msra.mxu0 0.0
        %2375 = vmatpush.msra.mxu0 0.0
        %2376 = vmatpush.msra.mxu0 0.0
        %2377 = vmatpush.msra.mxu0 0.0
        %2378 = vmatpush.msra.mxu0 0.0
        %2379 = vmatpush.msra.mxu0 0.0
        %2380 = vmatpush.msra.mxu0 0.0
        %2381 = vmatpush.msra.mxu0 0.0
        %2382 = vmatpush.msra.mxu0 0.0
        %v2383 = vand.u32 %v2239, 4294901760
        %2384 = vmatpush.msra.mxu0 %v2383
        %v2385 = vand.u32 %v2242, 4294901760
        %2386 = vmatmul.f32.gmra.mxu0 %v2385
        %v2387 = vpop.f32.mrf.mxu0
        %v2388 = vadd.f32 %v2366, %v2387
        %2389 = vdwg.mxu0
        %v2390 = vadd.f32 %v1911, %v2388
        %v2391 = vld [vmem:[%s4] sm:$0x1]
        %v2393 = vperm.slane %v2391, 0
        %v2395 = vadd.f32 %v2390, %v2393
        %2396 = vst.msk [vmem:[%s274] sm:$0xff] %vm284, %v2395
        %s2397 = sand.u32 %s141, 1
        %s2398 = scalar_lea.sflag [#allocation4], %s2397
        %s2399 = sand.u32 %s141, 1
        %s2400 = smul.addr %s2399, 8
        %s2401 = scalar_lea.vmem [#allocation8], %s2400
        // Predicated region
        $region53: #{tpu_custom_call.1} parent=39 // pred_check
          %p2402 = pneg %p151
        $region54: #{tpu_custom_call.1} parent=39 // pred_check_branch
          %2404 = sbr.rel (%p2402) target = $region56
        $region55: #{tpu_custom_call.1} parent=39 // pred_region
          %2406 = vsyncadd %s2398, 0
          %s2407 = smul.addr %s23, 8
          %s2408 = scalar_lea.hbm %s5, %s2407
          %s2410 = sshll.u32 %s2401, 4
          %s2411 = int_to_ptr.vmem [resolvable:$true] %s2410
          %s2412 = sshll.u32 %s2408, 4
          %s2413 = int_to_ptr.hbm [resolvable:$true] %s2412
          %2415 = dma.vmem_to_hbm [thread:$0]  %s2411, 128, %s2413, %s2398
        $region56: #{tpu_custom_call.1} parent=39 // pred_fallthru
          _
      $region40: #{tpu_custom_call.1} parent=5 // pred_fallthru
        _
      %p2416 = scmp.le.s32.totalorder 2, %s18
      // Predicated region
      $region57: #{tpu_custom_call.1} parent=5 // pred_check
        %p2417 = pneg %p2416
      $region58: #{tpu_custom_call.1} parent=5 // pred_check_branch
        %2419 = sbr.rel (%p2417) target = $region60
      $region59: #{tpu_custom_call.1} parent=5 // pred_region
        %s2420 = ssub.s32 %s18, 2
        // Predicated region
        $region61: #{tpu_custom_call.1} parent=59 // pred_check
          %p2421 = pneg %p157
        $region62: #{tpu_custom_call.1} parent=59 // pred_check_branch
          %2423 = sbr.rel (%p2421) target = $region64
        $region63: #{tpu_custom_call.1} parent=59 // pred_region
          %s2424 = sand.u32 %s142, 1
          %s2425 = scalar_lea.sflag [#allocation4], %s2424
          %s2426 = sand.u32 %s142, 1
          %s2427 = smul.addr %s2426, 8
          %s2428 = scalar_lea.vmem [#allocation8], %s2427
          %2430 = dma.done %s2425, 128
        $region64: #{tpu_custom_call.1} parent=59 // pred_fallthru
          _
      $region60: #{tpu_custom_call.1} parent=5 // pred_fallthru
        _
    $region6: #{tpu_custom_call.1} parent=1 // loop_footer
      %s22 = sadd.s32 1, %s18
    $region7: #{tpu_custom_call.1} parent=1 // loop_footer_branch
      %17 = sbr.rel target = $region3
    $region8: #{tpu_custom_call.1} parent=1 // loop_exit
      _
    %2431 = vsyncpa [#allocation3], 1
    %s2432 = scalar_lea.sflag [#allocation3], 1
    %2433 = vsyncpa %s2432, 1
    %2434 = vsyncpa [#allocation6], 1
    %2435 = vsyncpa [#allocation4], 1
    %s2436 = scalar_lea.sflag [#allocation4], 1
    %2437 = vsyncpa %s2436, 1

</llo_original>
